<compile_context>
chip_gen: v7x
topology: tpu7x:2x2x1
jax: 0.10.0
libtpu: 0.0.40
codegen_flags: <defaults>
</compile_context>

<pallas_src>
import jax
import jax.numpy as jnp
from jax.experimental import pallas as pl
from jax.experimental.pallas import tpu as pltpu


# ----------------------------------------------------------------------------
# Kernel: one batch tile of the fused TEA forward.
# Weights arrive pre-transposed as [in, out]; biases as [1, out] in f32.
# ----------------------------------------------------------------------------
def _tea_kernel(x_ref, y_ref,
                wx_ref, bx_ref,
                wy_ref, by_ref,
                wp_ref, bp_ref,
                yhat_ref, zy_ref, zx_ref):
    # Z_from_X = X @ Wx + bx        (f32 accumulate, f32 bias add)
    zx = jnp.dot(x_ref[...], wx_ref[...],
                 preferred_element_type=jnp.float32) + bx_ref[...]
    # Z_from_Y = Y @ Wy + by
    zy = jnp.dot(y_ref[...], wy_ref[...],
                 preferred_element_type=jnp.float32) + by_ref[...]
    # Y_hat = Z_from_Y @ Wp + bp    (chained; cast back to MXU compute dtype)
    yhat = jnp.dot(zy.astype(wp_ref.dtype), wp_ref[...],
                   preferred_element_type=jnp.float32) + bp_ref[...]

    zx_ref[...] = zx.astype(zx_ref.dtype)
    zy_ref[...] = zy.astype(zy_ref.dtype)
    yhat_ref[...] = yhat.astype(yhat_ref.dtype)


# ----------------------------------------------------------------------------
# One-time parameter preparation (amortized: NOT per forward call).
# PyTorch stores Linear weights as [out, in]; we keep [in, out] + [1, out] bias.
# ----------------------------------------------------------------------------
def prepare_params(params, compute_dtype=jnp.bfloat16):
    (wx, bx), (wy, by), (wp, bp) = (
        params["input_X"], params["input_Y"], params["predict_Y"])
    return {
        "wx_t": wx.T.astype(compute_dtype),        # [input_dim,  hidden_dim]
        "wy_t": wy.T.astype(compute_dtype),        # [output_dim, hidden_dim]
        "wp_t": wp.T.astype(compute_dtype),        # [hidden_dim, output_dim]
        "bx": bx.reshape(1, -1).astype(jnp.float32),
        "by": by.reshape(1, -1).astype(jnp.float32),
        "bp": bp.reshape(1, -1).astype(jnp.float32),
    }


def linear_tea_forward(X, Y, prepared, *, block_b=256):
    """Fused Pallas forward. Returns (Y_hat, Z_from_Y, Z_from_X), matching PyTorch."""
    wx_t, wy_t, wp_t = prepared["wx_t"], prepared["wy_t"], prepared["wp_t"]
    bx, by, bp = prepared["bx"], prepared["by"], prepared["bp"]
    compute_dtype = wx_t.dtype

    B, input_dim = X.shape
    _, output_dim = Y.shape
    hidden_dim = wx_t.shape[1]
    out_dtype = X.dtype

    # Batch tile: large enough to amortize per-step overhead and fill the MXU,
    # small enough that double-buffered tiles sit well under v7x's 64 MiB VMEM.
    tb = min(block_b, B)
    tb = max(8, -(-tb // 8) * 8)               # sublane (8) multiple
    b_pad = -(-B // tb) * tb
    if b_pad != B:
        X = jnp.pad(X, ((0, b_pad - B), (0, 0)))
        Y = jnp.pad(Y, ((0, b_pad - B), (0, 0)))

    Xc = X.astype(compute_dtype)
    Yc = Y.astype(compute_dtype)

    grid = (b_pad // tb,)

    tiled = lambda cols: pl.BlockSpec((tb, cols), lambda i: (i, 0))       # per batch tile
    resident = lambda shape: pl.BlockSpec(shape, lambda i: (0, 0))        # stays in VMEM

    itemsize = lambda a: a.size * a.dtype.itemsize
    flops = 2 * b_pad * (input_dim * hidden_dim
                         + output_dim * hidden_dim
                         + hidden_dim * output_dim)
    bytes_accessed = (itemsize(Xc) + itemsize(Yc)
                      + sum(itemsize(a) for a in (wx_t, wy_t, wp_t, bx, by, bp))
                      + b_pad * (output_dim + 2 * hidden_dim) * jnp.dtype(out_dtype).itemsize)

    out_shapes = (
        jax.ShapeDtypeStruct((b_pad, output_dim), out_dtype),   # Y_hat
        jax.ShapeDtypeStruct((b_pad, hidden_dim), out_dtype),   # Z_from_Y
        jax.ShapeDtypeStruct((b_pad, hidden_dim), out_dtype),   # Z_from_X
    )

    yhat, zy, zx = pl.pallas_call(
        _tea_kernel,
        out_shape=out_shapes,
        grid_spec=pltpu.PrefetchScalarGridSpec(
            num_scalar_prefetch=0,
            grid=grid,
            in_specs=[
                tiled(input_dim), tiled(output_dim),
                resident(wx_t.shape), resident(bx.shape),
                resident(wy_t.shape), resident(by.shape),
                resident(wp_t.shape), resident(bp.shape),
            ],
            out_specs=[
                tiled(output_dim),
                tiled(hidden_dim),
                tiled(hidden_dim),
            ],
        ),
        compiler_params=pltpu.CompilerParams(
            dimension_semantics=("parallel",),           # shards across v7x's 2 TCs
            vmem_limit_bytes=48 * 1024 * 1024,           # within v7x 64 MiB physical
        ),
        cost_estimate=pl.CostEstimate(
            flops=flops, transcendentals=0, bytes_accessed=bytes_accessed),
    )(Xc, Yc, wx_t, bx, wy_t, by, wp_t, bp)

    if b_pad != B:
        yhat, zy, zx = yhat[:B], zy[:B], zx[:B]
    return yhat, zy, zx


# ----------------------------------------------------------------------------
# Deterministic nn.Linear-style init (uniform in +-1/sqrt(fan_in)),
# stored in PyTorch convention ([out, in] weights, [out] biases).
# ----------------------------------------------------------------------------
def init_params(key, input_dim, hidden_dim, output_dim, dtype=jnp.float32):
    def linear_init(k, fan_in, fan_out):
        k_w, k_b = jax.random.split(k)
        bound = 1.0 / jnp.sqrt(fan_in)
        w = jax.random.uniform(k_w, (fan_out, fan_in), dtype, -bound, bound)
        b = jax.random.uniform(k_b, (fan_out,), dtype, -bound, bound)
        return w, b

    k1, k2, k3 = jax.random.split(key, 3)
    return {
        "input_X":   linear_init(k1, input_dim, hidden_dim),
        "input_Y":   linear_init(k2, output_dim, hidden_dim),
        "predict_Y": linear_init(k3, hidden_dim, output_dim),
    }


def _reference_forward(X, Y, params):
    (wx, bx), (wy, by), (wp, bp) = (
        params["input_X"], params["input_Y"], params["predict_Y"])
    zx = X @ wx.T + bx
    zy = Y @ wy.T + by
    yhat = zy @ wp.T + bp
    return yhat, zy, zx


# TODO(synk): update_batch / loss / optimizer step (training loop) is host-side
# PyTorch glue, not part of the forward kernel; predict_Y_from_X is a trivial
# composition of the same two matmuls and is not separately kernelized.

if __name__ == "__main__":
    # Small, lane-dense shapes (feature dims are multiples of 128 so the
    # zx/zy/yhat stores are unmasked full-lane vst's).
    B, input_dim, hidden_dim, output_dim = 512, 128, 128, 256

    key = jax.random.PRNGKey(0)
    k_x, k_y, k_p = jax.random.split(key, 3)

    X = jax.random.normal(k_x, (B, input_dim), jnp.float32)
    Y = jax.random.normal(k_y, (B, output_dim), jnp.float32)
    params = init_params(k_p, input_dim, hidden_dim, output_dim)

    ref_yhat, ref_zy, ref_zx = _reference_forward(X, Y, params)

    # Default path: bf16 MXU inputs, f32 accumulation -> loose tolerance.
    prep_bf16 = prepare_params(params, compute_dtype=jnp.bfloat16)
    yhat, zy, zx = linear_tea_forward(X, Y, prep_bf16, block_b=256)
    jax.block_until_ready((yhat, zy, zx))
    assert jnp.allclose(yhat, ref_yhat, atol=5e-2, rtol=5e-2)
    assert jnp.allclose(zy, ref_zy, atol=5e-2, rtol=5e-2)
    assert jnp.allclose(zx, ref_zx, atol=5e-2, rtol=5e-2)

    # f32 path: tight(er) tolerance sanity check of the kernel structure.
    prep_f32 = prepare_params(params, compute_dtype=jnp.float32)
    yhat32, zy32, zx32 = linear_tea_forward(X, Y, prep_f32, block_b=256)
    jax.block_until_ready((yhat32, zy32, zx32))
    assert jnp.allclose(yhat32, ref_yhat, atol=1e-4, rtol=1e-4)
    assert jnp.allclose(zy32, ref_zy, atol=1e-4, rtol=1e-4)
    assert jnp.allclose(zx32, ref_zx, atol=1e-4, rtol=1e-4)

    print("KERNEL_OK")
</pallas_src>

<mosaic_0001>
module attributes {stable_mosaic.version = 11 : i64} {
  func.func @_tea_kernel(%arg0: i32, %arg1: memref<256x128xbf16, #tpu.memory_space<vmem>>, %arg2: memref<256x256xbf16, #tpu.memory_space<vmem>>, %arg3: memref<128x128xbf16, #tpu.memory_space<vmem>>, %arg4: memref<1x128xf32, #tpu.memory_space<vmem>>, %arg5: memref<256x128xbf16, #tpu.memory_space<vmem>>, %arg6: memref<1x128xf32, #tpu.memory_space<vmem>>, %arg7: memref<128x256xbf16, #tpu.memory_space<vmem>>, %arg8: memref<1x256xf32, #tpu.memory_space<vmem>>, %arg9: memref<256x256xf32, #tpu.memory_space<vmem>>, %arg10: memref<256x128xf32, #tpu.memory_space<vmem>>, %arg11: memref<256x128xf32, #tpu.memory_space<vmem>>) attributes {dimension_semantics = [#tpu.dimension_semantics<parallel>], iteration_bounds = array<i64: 2>, scalar_prefetch = 0 : i64, scratch_operands = 0 : i64, tpu.core_type = #tpu.core_type<tc>, window_params = [{transform_indices = @transform_0, window_bounds = array<i64: 256, 128>}, {transform_indices = @transform_1, window_bounds = array<i64: 256, 256>}, {pipeline_mode = #tpu.pipeline_mode<synchronous>, transform_indices = @transform_2, window_bounds = array<i64: 128, 128>}, {pipeline_mode = #tpu.pipeline_mode<synchronous>, transform_indices = @transform_3, window_bounds = array<i64: 1, 128>}, {pipeline_mode = #tpu.pipeline_mode<synchronous>, transform_indices = @transform_4, window_bounds = array<i64: 256, 128>}, {pipeline_mode = #tpu.pipeline_mode<synchronous>, transform_indices = @transform_5, window_bounds = array<i64: 1, 128>}, {pipeline_mode = #tpu.pipeline_mode<synchronous>, transform_indices = @transform_6, window_bounds = array<i64: 128, 256>}, {pipeline_mode = #tpu.pipeline_mode<synchronous>, transform_indices = @transform_7, window_bounds = array<i64: 1, 256>}, {transform_indices = @transform_8, window_bounds = array<i64: 256, 256>}, {transform_indices = @transform_9, window_bounds = array<i64: 256, 128>}, {transform_indices = @transform_10, window_bounds = array<i64: 256, 128>}]} {
    %c0 = arith.constant 0 : index
    %c0_0 = arith.constant 0 : index
    %0 = vector.load %arg1[%c0, %c0_0] : memref<256x128xbf16, #tpu.memory_space<vmem>>, vector<256x128xbf16>
    %c0_1 = arith.constant 0 : index
    %c0_2 = arith.constant 0 : index
    %1 = vector.load %arg3[%c0_1, %c0_2] : memref<128x128xbf16, #tpu.memory_space<vmem>>, vector<128x128xbf16>
    %cst = arith.constant dense<0.000000e+00> : vector<256x128xf32>
    %2 = tpu.matmul %0, %1, %cst {dimension_numbers = #tpu.dot_dimension_numbers<[1], [0], [0], [1], [0, 0, 1, 1], [], []>} : vector<256x128xbf16>, vector<128x128xbf16>, vector<256x128xf32> -> vector<256x128xf32>
    %c0_3 = arith.constant 0 : index
    %c0_4 = arith.constant 0 : index
    %3 = vector.load %arg4[%c0_3, %c0_4] : memref<1x128xf32, #tpu.memory_space<vmem>>, vector<1x128xf32>
    %4 = vector.broadcast %3 : vector<1x128xf32> to vector<256x128xf32>
    %5 = arith.addf %2, %4 : vector<256x128xf32>
    %c0_5 = arith.constant 0 : index
    %c0_6 = arith.constant 0 : index
    %6 = vector.load %arg2[%c0_5, %c0_6] : memref<256x256xbf16, #tpu.memory_space<vmem>>, vector<256x256xbf16>
    %c0_7 = arith.constant 0 : index
    %c0_8 = arith.constant 0 : index
    %7 = vector.load %arg5[%c0_7, %c0_8] : memref<256x128xbf16, #tpu.memory_space<vmem>>, vector<256x128xbf16>
    %cst_9 = arith.constant dense<0.000000e+00> : vector<256x128xf32>
    %8 = tpu.matmul %6, %7, %cst_9 {dimension_numbers = #tpu.dot_dimension_numbers<[1], [0], [0], [1], [0, 0, 1, 1], [], []>} : vector<256x256xbf16>, vector<256x128xbf16>, vector<256x128xf32> -> vector<256x128xf32>
    %c0_10 = arith.constant 0 : index
    %c0_11 = arith.constant 0 : index
    %9 = vector.load %arg6[%c0_10, %c0_11] : memref<1x128xf32, #tpu.memory_space<vmem>>, vector<1x128xf32>
    %10 = vector.broadcast %9 : vector<1x128xf32> to vector<256x128xf32>
    %11 = arith.addf %8, %10 : vector<256x128xf32>
    %12 = arith.truncf %11 : vector<256x128xf32> to vector<256x128xbf16>
    %c0_12 = arith.constant 0 : index
    %c0_13 = arith.constant 0 : index
    %13 = vector.load %arg7[%c0_12, %c0_13] : memref<128x256xbf16, #tpu.memory_space<vmem>>, vector<128x256xbf16>
    %cst_14 = arith.constant dense<0.000000e+00> : vector<256x256xf32>
    %14 = tpu.matmul %12, %13, %cst_14 {dimension_numbers = #tpu.dot_dimension_numbers<[1], [0], [0], [1], [0, 0, 1, 1], [], []>} : vector<256x128xbf16>, vector<128x256xbf16>, vector<256x256xf32> -> vector<256x256xf32>
    %c0_15 = arith.constant 0 : index
    %c0_16 = arith.constant 0 : index
    %15 = vector.load %arg8[%c0_15, %c0_16] : memref<1x256xf32, #tpu.memory_space<vmem>>, vector<1x256xf32>
    %16 = vector.broadcast %15 : vector<1x256xf32> to vector<256x256xf32>
    %17 = arith.addf %14, %16 : vector<256x256xf32>
    %c0_17 = arith.constant 0 : index
    %c0_18 = arith.constant 0 : index
    %18 = vector.load %arg11[%c0_17, %c0_18] : memref<256x128xf32, #tpu.memory_space<vmem>>, vector<256x128xf32>
    tpu.vector_store %arg11[%c0_17, %c0_18], %5 {strides = array<i32>} : memref<256x128xf32, #tpu.memory_space<vmem>>, vector<256x128xf32>,
    %c0_19 = arith.constant 0 : index
    %c0_20 = arith.constant 0 : index
    %19 = vector.load %arg10[%c0_19, %c0_20] : memref<256x128xf32, #tpu.memory_space<vmem>>, vector<256x128xf32>
    tpu.vector_store %arg10[%c0_19, %c0_20], %11 {strides = array<i32>} : memref<256x128xf32, #tpu.memory_space<vmem>>, vector<256x128xf32>,
    %c0_21 = arith.constant 0 : index
    %c0_22 = arith.constant 0 : index
    %20 = vector.load %arg9[%c0_21, %c0_22] : memref<256x256xf32, #tpu.memory_space<vmem>>, vector<256x256xf32>
    tpu.vector_store %arg9[%c0_21, %c0_22], %17 {strides = array<i32>} : memref<256x256xf32, #tpu.memory_space<vmem>>, vector<256x256xf32>,
    return
  }
  func.func @transform_0(%arg0: i32) -> (i32, i32) {
    %c0_i32 = arith.constant 0 : i32
    %c0_i32_0 = arith.constant 0 : i32
    return %arg0, %c0_i32 : i32, i32
  }
  func.func @transform_1(%arg0: i32) -> (i32, i32) {
    %c0_i32 = arith.constant 0 : i32
    %c0_i32_0 = arith.constant 0 : i32
    return %arg0, %c0_i32 : i32, i32
  }
  func.func @transform_2(%arg0: i32) -> (i32, i32) {
    %c0_i32 = arith.constant 0 : i32
    %c0_i32_0 = arith.constant 0 : i32
    %c0_i32_1 = arith.constant 0 : i32
    return %c0_i32, %c0_i32_0 : i32, i32
  }
  func.func @transform_3(%arg0: i32) -> (i32, i32) {
    %c0_i32 = arith.constant 0 : i32
    %c0_i32_0 = arith.constant 0 : i32
    %c0_i32_1 = arith.constant 0 : i32
    return %c0_i32, %c0_i32_0 : i32, i32
  }
  func.func @transform_4(%arg0: i32) -> (i32, i32) {
    %c0_i32 = arith.constant 0 : i32
    %c0_i32_0 = arith.constant 0 : i32
    %c0_i32_1 = arith.constant 0 : i32
    return %c0_i32, %c0_i32_0 : i32, i32
  }
  func.func @transform_5(%arg0: i32) -> (i32, i32) {
    %c0_i32 = arith.constant 0 : i32
    %c0_i32_0 = arith.constant 0 : i32
    %c0_i32_1 = arith.constant 0 : i32
    return %c0_i32, %c0_i32_0 : i32, i32
  }
  func.func @transform_6(%arg0: i32) -> (i32, i32) {
    %c0_i32 = arith.constant 0 : i32
    %c0_i32_0 = arith.constant 0 : i32
    %c0_i32_1 = arith.constant 0 : i32
    return %c0_i32, %c0_i32_0 : i32, i32
  }
  func.func @transform_7(%arg0: i32) -> (i32, i32) {
    %c0_i32 = arith.constant 0 : i32
    %c0_i32_0 = arith.constant 0 : i32
    %c0_i32_1 = arith.constant 0 : i32
    return %c0_i32, %c0_i32_0 : i32, i32
  }
  func.func @transform_8(%arg0: i32) -> (i32, i32) {
    %c0_i32 = arith.constant 0 : i32
    %c0_i32_0 = arith.constant 0 : i32
    return %arg0, %c0_i32 : i32, i32
  }
  func.func @transform_9(%arg0: i32) -> (i32, i32) {
    %c0_i32 = arith.constant 0 : i32
    %c0_i32_0 = arith.constant 0 : i32
    return %arg0, %c0_i32 : i32, i32
  }
  func.func @transform_10(%arg0: i32) -> (i32, i32) {
    %c0_i32 = arith.constant 0 : i32
    %c0_i32_0 = arith.constant 0 : i32
    return %arg0, %c0_i32 : i32, i32
  }
}

</mosaic_0001>

<llo_original>
// kernel: tpu_custom_call.1
$region0: #{tpu_custom_call.1}
  #allocation0 [shape = 'u32[]', space=smem, size = 0x4, offset = 0x4, fixed_abs, tag = 'smem constant byte address 0x4 - core index']
  #allocation1 [shape = 'u32[144,128]{1,0:T(1,128)}', space=vmem, size = 0x12000, scoped, tag = 'internal scratch']
  %s0 = inlined_call_operand.hbm [shape: bf16[512,128], index: 0, kind: input, shape index: {}]
  %s1 = inlined_call_operand.hbm [shape: bf16[512,256], index: 1, kind: input, shape index: {}]
  %s2 = inlined_call_operand.hbm [shape: bf16[128,128], index: 2, kind: input, shape index: {}]
  %s3 = inlined_call_operand.vmem [shape: f32[1,128], index: 3, kind: input, shape index: {}]
  %s4 = inlined_call_operand.hbm [shape: bf16[256,128], index: 4, kind: input, shape index: {}]
  %s5 = inlined_call_operand.vmem [shape: f32[1,128], index: 5, kind: input, shape index: {}]
  %s6 = inlined_call_operand.hbm [shape: bf16[128,256], index: 6, kind: input, shape index: {}]
  %s7 = inlined_call_operand.vmem [shape: f32[1,256], index: 7, kind: input, shape index: {}]
  %s8 = inlined_call_operand.hbm [shape: f32[512,256], index: 8, kind: output, shape index: {0}]
  %s9 = inlined_call_operand.hbm [shape: f32[512,128], index: 9, kind: output, shape index: {1}]
  %s10 = inlined_call_operand.hbm [shape: f32[512,128], index: 10, kind: output, shape index: {2}]
  %11 = xla_tuple %s8, %s9, %s10
  %s12 = sld [smem:[#allocation0]]
  $region101: #{tpu_custom_call.1} parent=0
    _
  %s14 = ssub.s32 1, %s12
  %s15 = scalar_select 0, %s14, %s12
  $region1: #{tpu_custom_call.1} parent=0
    #allocation2 [shape = 'u8[131072]{0}', space=vmem, size = 0x20000, scoped, tag = 'input window, operand 0']
    #allocation3 [shape = 's32[2]{0}', space=sflag, size = 0x8, scoped, tag = 'scoped memory for tpu_custom_call.1']
    #allocation4 [shape = 's32[2]{0}', space=sflag, size = 0x8, scoped, tag = 'scoped memory for tpu_custom_call.1']
    #allocation5 [shape = 'u8[262144]{0}', space=vmem, size = 0x40000, scoped, tag = 'input window, operand 1']
    #allocation6 [shape = 's32[2]{0}', space=sflag, size = 0x8, scoped, tag = 'scoped memory for tpu_custom_call.1']
    #allocation7 [shape = 'u8[32768]{0}', space=vmem, size = 0x8000, scoped, tag = 'input window, operand 2, single buffered']
    #allocation8 [shape = 'u8[65536]{0}', space=vmem, size = 0x10000, scoped, tag = 'input window, operand 4, single buffered']
    #allocation9 [shape = 's32[1]{0}', space=sflag, size = 0x4, scoped, tag = 'scoped memory for tpu_custom_call.1']
    #allocation10 [shape = 'u8[65536]{0}', space=vmem, size = 0x10000, scoped, tag = 'input window, operand 6, single buffered']
    #allocation11 [shape = 'u8[524288]{0}', space=vmem, size = 0x80000, scoped, tag = 'output window, operand 0']
    #allocation12 [shape = 'u8[262144]{0}', space=vmem, size = 0x40000, scoped, tag = 'output window, operand 1']
    #allocation13 [shape = 's32[2]{0}', space=sflag, size = 0x8, scoped, tag = 'scoped memory for tpu_custom_call.1']
    #allocation14 [shape = 'u8[262144]{0}', space=vmem, size = 0x40000, scoped, tag = 'output window, operand 2']
    %16 = vsyncpa [#allocation3], 0
    %s17 = scalar_lea.sflag [#allocation3], 1
    %18 = vsyncpa %s17, 0
    %19 = vsyncpa [#allocation6], 0
    %s20 = scalar_lea.sflag [#allocation6], 1
    %21 = vsyncpa %s20, 0
    %22 = vsyncpa [#allocation9], 0
    %23 = vsyncpa [#allocation4], 0
    %s24 = scalar_lea.sflag [#allocation4], 1
    %25 = vsyncpa %s24, 0
    %26 = vsyncpa [#allocation13], 0
    %s27 = scalar_lea.sflag [#allocation13], 1
    %28 = vsyncpa %s27, 0
    loop: start=0, step=1, limit=4
    $region2: #{tpu_custom_call.1} parent=1 // loop_pre_header
      _
    $region3: #{tpu_custom_call.1} parent=1 // loop_header
      %s30 = sphi 0, %s34
      %p31 = scmp.ge.s32.totalorder %s30, 4
      %s40 = sphi 0, %s42
      %s43 = sphi 0, %s40
      %s44 = sphi 0, %s43
      %s60 = sphi 0, %s44
      %s66 = sphi 0, %s68
      %s69 = sphi 0, %s66
      %s70 = sphi 0, %s69
      %s86 = sphi 0, %s70
      %s90 = sphi 0, %s90
      %s92 = sphi 0, %s90
      %s93 = sphi 0, %s92
      %s107 = sphi 0, %s93
      %s111 = sphi 0, %s111
      %s113 = sphi 0, %s111
      %s114 = sphi 0, %s113
      %s128 = sphi 0, %s114
      %s132 = sphi 0, %s132
      %s134 = sphi 0, %s132
      %s135 = sphi 0, %s134
      %s149 = sphi 0, %s135
      %s153 = sphi 0, %s153
      %s155 = sphi 0, %s153
      %s156 = sphi 0, %s155
      %s170 = sphi 0, %s156
      %s174 = sphi 0, %s174
      %s176 = sphi 0, %s174
      %s177 = sphi 0, %s176
      %s191 = sphi 0, %s177
      %s195 = sphi 0, %s195
      %s197 = sphi 0, %s195
      %s198 = sphi 0, %s197
      %s212 = sphi 0, %s198
      %s218 = sphi 0, %s220
      %s221 = sphi 0, %s218
      %s222 = sphi 0, %s221
      %s238 = sphi 0, %s222
      %s244 = sphi 0, %s246
      %s247 = sphi 0, %s244
      %s248 = sphi 0, %s247
      %s264 = sphi 0, %s248
      %s270 = sphi 0, %s272
      %s273 = sphi 0, %s270
      %s274 = sphi 0, %s273
      %s290 = sphi 0, %s274
    $region4: #{tpu_custom_call.1} parent=1 // loop_header_branch
      %33 = sbr.rel (%p31) target = $region8
    $region5: #{tpu_custom_call.1} parent=1 // loop_body
      %s35 = ssub.s32 %s30, 1
      %s36 = ssub.s32 %s30, 2
      %s37 = sadd.s32 %s30, 1
      %s38 = ssub.s32 %s30, %s37
      %p39 = scmp.eq.s32.totalorder %s38, 0
      %s41 = sadd.s32 %s40, 1
      %s42 = scalar_select %p39, %s40, %s41
      %p45 = pneg %p39
      %p46 = scmp.eq.s32.totalorder %s30, 1
      %p47 = por %p45, %p46
      %p48 = scmp.ne.s32.totalorder %s40, %s43
      %p49 = scmp.eq.s32.totalorder %s30, 0
      %p50 = por %p48, %p49
      %p51 = scmp.ne.s32.totalorder %s40, %s43
      %p52 = scmp.eq.s32.totalorder %s35, 1
      %p53 = por %p51, %p52
      %p54 = scmp.ne.s32.totalorder %s43, %s44
      %p55 = scmp.eq.s32.totalorder %s35, 0
      %p56 = por %p54, %p55
      %p57 = scmp.ne.s32.totalorder %s43, %s44
      %p58 = scmp.eq.s32.totalorder %s36, 1
      %p59 = por %p57, %p58
      %p61 = scmp.ne.s32.totalorder %s44, %s60
      %p62 = scmp.eq.s32.totalorder %s36, 0
      %p63 = por %p61, %p62
      %s64 = ssub.s32 %s30, %s37
      %p65 = scmp.eq.s32.totalorder %s64, 0
      %s67 = sadd.s32 %s66, 1
      %s68 = scalar_select %p65, %s66, %s67
      %p71 = pneg %p65
      %p72 = scmp.eq.s32.totalorder %s30, 1
      %p73 = por %p71, %p72
      %p74 = scmp.ne.s32.totalorder %s66, %s69
      %p75 = scmp.eq.s32.totalorder %s30, 0
      %p76 = por %p74, %p75
      %p77 = scmp.ne.s32.totalorder %s66, %s69
      %p78 = scmp.eq.s32.totalorder %s35, 1
      %p79 = por %p77, %p78
      %p80 = scmp.ne.s32.totalorder %s69, %s70
      %p81 = scmp.eq.s32.totalorder %s35, 0
      %p82 = por %p80, %p81
      %p83 = scmp.ne.s32.totalorder %s69, %s70
      %p84 = scmp.eq.s32.totalorder %s36, 1
      %p85 = por %p83, %p84
      %p87 = scmp.ne.s32.totalorder %s70, %s86
      %p88 = scmp.eq.s32.totalorder %s36, 0
      %p89 = por %p87, %p88
      %s91 = sadd.s32 %s90, 1
      %p94 = scmp.eq.s32.totalorder %s30, 1
      %p95 = scmp.ne.s32.totalorder %s90, %s92
      %p96 = scmp.eq.s32.totalorder %s30, 0
      %p97 = por %p95, %p96
      %p98 = scmp.ne.s32.totalorder %s90, %s92
      %p99 = scmp.eq.s32.totalorder %s35, 1
      %p100 = por %p98, %p99
      %p101 = scmp.ne.s32.totalorder %s92, %s93
      %p102 = scmp.eq.s32.totalorder %s35, 0
      %p103 = por %p101, %p102
      %p104 = scmp.ne.s32.totalorder %s92, %s93
      %p105 = scmp.eq.s32.totalorder %s36, 1
      %p106 = por %p104, %p105
      %p108 = scmp.ne.s32.totalorder %s93, %s107
      %p109 = scmp.eq.s32.totalorder %s36, 0
      %p110 = por %p108, %p109
      %s112 = sadd.s32 %s111, 1
      %p115 = scmp.eq.s32.totalorder %s30, 1
      %p116 = scmp.ne.s32.totalorder %s111, %s113
      %p117 = scmp.eq.s32.totalorder %s30, 0
      %p118 = por %p116, %p117
      %p119 = scmp.ne.s32.totalorder %s111, %s113
      %p120 = scmp.eq.s32.totalorder %s35, 1
      %p121 = por %p119, %p120
      %p122 = scmp.ne.s32.totalorder %s113, %s114
      %p123 = scmp.eq.s32.totalorder %s35, 0
      %p124 = por %p122, %p123
      %p125 = scmp.ne.s32.totalorder %s113, %s114
      %p126 = scmp.eq.s32.totalorder %s36, 1
      %p127 = por %p125, %p126
      %p129 = scmp.ne.s32.totalorder %s114, %s128
      %p130 = scmp.eq.s32.totalorder %s36, 0
      %p131 = por %p129, %p130
      %s133 = sadd.s32 %s132, 1
      %p136 = scmp.eq.s32.totalorder %s30, 1
      %p137 = scmp.ne.s32.totalorder %s132, %s134
      %p138 = scmp.eq.s32.totalorder %s30, 0
      %p139 = por %p137, %p138
      %p140 = scmp.ne.s32.totalorder %s132, %s134
      %p141 = scmp.eq.s32.totalorder %s35, 1
      %p142 = por %p140, %p141
      %p143 = scmp.ne.s32.totalorder %s134, %s135
      %p144 = scmp.eq.s32.totalorder %s35, 0
      %p145 = por %p143, %p144
      %p146 = scmp.ne.s32.totalorder %s134, %s135
      %p147 = scmp.eq.s32.totalorder %s36, 1
      %p148 = por %p146, %p147
      %p150 = scmp.ne.s32.totalorder %s135, %s149
      %p151 = scmp.eq.s32.totalorder %s36, 0
      %p152 = por %p150, %p151
      %s154 = sadd.s32 %s153, 1
      %p157 = scmp.eq.s32.totalorder %s30, 1
      %p158 = scmp.ne.s32.totalorder %s153, %s155
      %p159 = scmp.eq.s32.totalorder %s30, 0
      %p160 = por %p158, %p159
      %p161 = scmp.ne.s32.totalorder %s153, %s155
      %p162 = scmp.eq.s32.totalorder %s35, 1
      %p163 = por %p161, %p162
      %p164 = scmp.ne.s32.totalorder %s155, %s156
      %p165 = scmp.eq.s32.totalorder %s35, 0
      %p166 = por %p164, %p165
      %p167 = scmp.ne.s32.totalorder %s155, %s156
      %p168 = scmp.eq.s32.totalorder %s36, 1
      %p169 = por %p167, %p168
      %p171 = scmp.ne.s32.totalorder %s156, %s170
      %p172 = scmp.eq.s32.totalorder %s36, 0
      %p173 = por %p171, %p172
      %s175 = sadd.s32 %s174, 1
      %p178 = scmp.eq.s32.totalorder %s30, 1
      %p179 = scmp.ne.s32.totalorder %s174, %s176
      %p180 = scmp.eq.s32.totalorder %s30, 0
      %p181 = por %p179, %p180
      %p182 = scmp.ne.s32.totalorder %s174, %s176
      %p183 = scmp.eq.s32.totalorder %s35, 1
      %p184 = por %p182, %p183
      %p185 = scmp.ne.s32.totalorder %s176, %s177
      %p186 = scmp.eq.s32.totalorder %s35, 0
      %p187 = por %p185, %p186
      %p188 = scmp.ne.s32.totalorder %s176, %s177
      %p189 = scmp.eq.s32.totalorder %s36, 1
      %p190 = por %p188, %p189
      %p192 = scmp.ne.s32.totalorder %s177, %s191
      %p193 = scmp.eq.s32.totalorder %s36, 0
      %p194 = por %p192, %p193
      %s196 = sadd.s32 %s195, 1
      %p199 = scmp.eq.s32.totalorder %s30, 1
      %p200 = scmp.ne.s32.totalorder %s195, %s197
      %p201 = scmp.eq.s32.totalorder %s30, 0
      %p202 = por %p200, %p201
      %p203 = scmp.ne.s32.totalorder %s195, %s197
      %p204 = scmp.eq.s32.totalorder %s35, 1
      %p205 = por %p203, %p204
      %p206 = scmp.ne.s32.totalorder %s197, %s198
      %p207 = scmp.eq.s32.totalorder %s35, 0
      %p208 = por %p206, %p207
      %p209 = scmp.ne.s32.totalorder %s197, %s198
      %p210 = scmp.eq.s32.totalorder %s36, 1
      %p211 = por %p209, %p210
      %p213 = scmp.ne.s32.totalorder %s198, %s212
      %p214 = scmp.eq.s32.totalorder %s36, 0
      %p215 = por %p213, %p214
      %s216 = ssub.s32 %s30, %s37
      %p217 = scmp.eq.s32.totalorder %s216, 0
      %s219 = sadd.s32 %s218, 1
      %s220 = scalar_select %p217, %s218, %s219
      %p223 = pneg %p217
      %p224 = scmp.eq.s32.totalorder %s30, 1
      %p225 = por %p223, %p224
      %p226 = scmp.ne.s32.totalorder %s218, %s221
      %p227 = scmp.eq.s32.totalorder %s30, 0
      %p228 = por %p226, %p227
      %p229 = scmp.ne.s32.totalorder %s218, %s221
      %p230 = scmp.eq.s32.totalorder %s35, 1
      %p231 = por %p229, %p230
      %p232 = scmp.ne.s32.totalorder %s221, %s222
      %p233 = scmp.eq.s32.totalorder %s35, 0
      %p234 = por %p232, %p233
      %p235 = scmp.ne.s32.totalorder %s221, %s222
      %p236 = scmp.eq.s32.totalorder %s36, 1
      %p237 = por %p235, %p236
      %p239 = scmp.ne.s32.totalorder %s222, %s238
      %p240 = scmp.eq.s32.totalorder %s36, 0
      %p241 = por %p239, %p240
      %s242 = ssub.s32 %s30, %s37
      %p243 = scmp.eq.s32.totalorder %s242, 0
      %s245 = sadd.s32 %s244, 1
      %s246 = scalar_select %p243, %s244, %s245
      %p249 = pneg %p243
      %p250 = scmp.eq.s32.totalorder %s30, 1
      %p251 = por %p249, %p250
      %p252 = scmp.ne.s32.totalorder %s244, %s247
      %p253 = scmp.eq.s32.totalorder %s30, 0
      %p254 = por %p252, %p253
      %p255 = scmp.ne.s32.totalorder %s244, %s247
      %p256 = scmp.eq.s32.totalorder %s35, 1
      %p257 = por %p255, %p256
      %p258 = scmp.ne.s32.totalorder %s247, %s248
      %p259 = scmp.eq.s32.totalorder %s35, 0
      %p260 = por %p258, %p259
      %p261 = scmp.ne.s32.totalorder %s247, %s248
      %p262 = scmp.eq.s32.totalorder %s36, 1
      %p263 = por %p261, %p262
      %p265 = scmp.ne.s32.totalorder %s248, %s264
      %p266 = scmp.eq.s32.totalorder %s36, 0
      %p267 = por %p265, %p266
      %s268 = ssub.s32 %s30, %s37
      %p269 = scmp.eq.s32.totalorder %s268, 0
      %s271 = sadd.s32 %s270, 1
      %s272 = scalar_select %p269, %s270, %s271
      %p275 = pneg %p269
      %p276 = scmp.eq.s32.totalorder %s30, 1
      %p277 = por %p275, %p276
      %p278 = scmp.ne.s32.totalorder %s270, %s273
      %p279 = scmp.eq.s32.totalorder %s30, 0
      %p280 = por %p278, %p279
      %p281 = scmp.ne.s32.totalorder %s270, %s273
      %p282 = scmp.eq.s32.totalorder %s35, 1
      %p283 = por %p281, %p282
      %p284 = scmp.ne.s32.totalorder %s273, %s274
      %p285 = scmp.eq.s32.totalorder %s35, 0
      %p286 = por %p284, %p285
      %p287 = scmp.ne.s32.totalorder %s273, %s274
      %p288 = scmp.eq.s32.totalorder %s36, 1
      %p289 = por %p287, %p288
      %p291 = scmp.ne.s32.totalorder %s274, %s290
      %p292 = scmp.eq.s32.totalorder %s36, 0
      %p293 = por %p291, %p292
      %p294 = scmp.le.s32.totalorder 1, %s30
      %p295 = scmp.lt.s32.totalorder %s30, 3
      %p296 = pnand %p294, %p295
      %p297 = pneg %p296
      // Predicated region
      $region9: #{tpu_custom_call.1} parent=5 // pred_check
        _
      $region10: #{tpu_custom_call.1} parent=5 // pred_check_branch
        %299 = sbr.rel (%p296) target = $region12
      $region11: #{tpu_custom_call.1} parent=5 // pred_region
        %s300 = ssub.s32 %s30, 1
        // Predicated region
        $region13: #{tpu_custom_call.1} parent=11 // pred_check
          %p301 = pneg %p103
        $region14: #{tpu_custom_call.1} parent=11 // pred_check_branch
          %303 = sbr.rel (%p301) target = $region16
        $region15: #{tpu_custom_call.1} parent=11 // pred_region
          %s305 = ssub.s32 1024, 1024
          %306 = vsyncadd [#allocation6], %s305
          %s307 = sshll.u32 [#allocation7], 4
          %s308 = int_to_ptr.vmem [resolvable:$true] %s307
          %313 = dma.hbm_to_vmem [thread:$0]  %s2, 1024, %s308, [#allocation6], 64, 64, 4
        $region16: #{tpu_custom_call.1} parent=11 // pred_fallthru
          _
        // Predicated region
        $region17: #{tpu_custom_call.1} parent=11 // pred_check
          %p314 = pneg %p124
        $region18: #{tpu_custom_call.1} parent=11 // pred_check_branch
          %316 = sbr.rel (%p314) target = $region20
        $region19: #{tpu_custom_call.1} parent=11 // pred_region
          _
        $region20: #{tpu_custom_call.1} parent=11 // pred_fallthru
          _
        // Predicated region
        $region21: #{tpu_custom_call.1} parent=11 // pred_check
          %p317 = pneg %p145
        $region22: #{tpu_custom_call.1} parent=11 // pred_check_branch
          %319 = sbr.rel (%p317) target = $region24
        $region23: #{tpu_custom_call.1} parent=11 // pred_region
          %s321 = ssub.s32 2048, 2048
          %322 = vsyncadd [#allocation9], %s321
          %s323 = sshll.u32 [#allocation8], 4
          %s324 = int_to_ptr.vmem [resolvable:$true] %s323
          %329 = dma.hbm_to_vmem [thread:$0]  %s4, 2048, %s324, [#allocation9], 64, 64, 4
        $region24: #{tpu_custom_call.1} parent=11 // pred_fallthru
          _
        // Predicated region
        $region25: #{tpu_custom_call.1} parent=11 // pred_check
          %p330 = pneg %p166
        $region26: #{tpu_custom_call.1} parent=11 // pred_check_branch
          %332 = sbr.rel (%p330) target = $region28
        $region27: #{tpu_custom_call.1} parent=11 // pred_region
          _
        $region28: #{tpu_custom_call.1} parent=11 // pred_fallthru
          _
        // Predicated region
        $region29: #{tpu_custom_call.1} parent=11 // pred_check
          %p333 = pneg %p187
        $region30: #{tpu_custom_call.1} parent=11 // pred_check_branch
          %335 = sbr.rel (%p333) target = $region32
        $region31: #{tpu_custom_call.1} parent=11 // pred_region
          %s337 = ssub.s32 2048, 2048
          %338 = vsyncadd [#allocation9], %s337
          %s339 = sshll.u32 [#allocation10], 4
          %s340 = int_to_ptr.vmem [resolvable:$true] %s339
          %345 = dma.hbm_to_vmem [thread:$0]  %s6, 2048, %s340, [#allocation9], 128, 128, 8
        $region32: #{tpu_custom_call.1} parent=11 // pred_fallthru
          _
        // Predicated region
        $region33: #{tpu_custom_call.1} parent=11 // pred_check
          %p346 = pneg %p208
        $region34: #{tpu_custom_call.1} parent=11 // pred_check_branch
          %348 = sbr.rel (%p346) target = $region36
        $region35: #{tpu_custom_call.1} parent=11 // pred_region
          _
        $region36: #{tpu_custom_call.1} parent=11 // pred_fallthru
          _
      $region12: #{tpu_custom_call.1} parent=5 // pred_fallthru
        _
      %p349 = scmp.lt.s32.totalorder %s30, 2
      // Predicated region
      $region37: #{tpu_custom_call.1} parent=5 // pred_check
        %p350 = pneg %p349
      $region38: #{tpu_custom_call.1} parent=5 // pred_check_branch
        %352 = sbr.rel (%p350) target = $region40
      $region39: #{tpu_custom_call.1} parent=5 // pred_region
        // Predicated region
        $region41: #{tpu_custom_call.1} parent=39 // pred_check
          %p353 = pneg %p50
        $region42: #{tpu_custom_call.1} parent=39 // pred_check_branch
          %355 = sbr.rel (%p353) target = $region44
        $region43: #{tpu_custom_call.1} parent=39 // pred_region
          %s356 = sand.u32 %s40, 1
          %s357 = scalar_lea.sflag [#allocation3], %s356
          %s358 = sand.u32 %s40, 1
          %s359 = smul.addr %s358, 128
          %s360 = scalar_lea.vmem [#allocation2], %s359
          %s361 = smul.u32 32, %s30
          %s363 = ssub.s32 2048, 2048
          %364 = vsyncadd %s357, %s363
          %s365 = smul.addr %s361, 64
          %s366 = scalar_lea.hbm %s0, %s365
          %s367 = sshll.u32 %s360, 4
          %s368 = int_to_ptr.vmem [resolvable:$true] %s367
          %373 = dma.hbm_to_vmem [thread:$0]  %s366, 2048, %s368, %s357, 64, 64, 4
        $region44: #{tpu_custom_call.1} parent=39 // pred_fallthru
          _
        // Predicated region
        $region45: #{tpu_custom_call.1} parent=39 // pred_check
          %p374 = pneg %p76
        $region46: #{tpu_custom_call.1} parent=39 // pred_check_branch
          %376 = sbr.rel (%p374) target = $region48
        $region47: #{tpu_custom_call.1} parent=39 // pred_region
          %s377 = sand.u32 %s30, 1
          %s378 = scalar_lea.sflag [#allocation6], %s377
          %s379 = sand.u32 %s66, 1
          %s380 = smul.addr %s379, 256
          %s381 = scalar_lea.vmem [#allocation5], %s380
          %s382 = smul.u32 32, %s30
          %s384 = ssub.s32 4096, 4096
          %385 = vsyncadd %s378, %s384
          %s386 = smul.addr %s382, 2
          %s387 = smul.addr %s386, 64
          %s388 = scalar_lea.hbm %s1, %s387
          %s389 = sshll.u32 %s381, 4
          %s390 = int_to_ptr.vmem [resolvable:$true] %s389
          %395 = dma.hbm_to_vmem [thread:$0]  %s388, 4096, %s390, %s378, 128, 128, 8
        $region48: #{tpu_custom_call.1} parent=39 // pred_fallthru
          _
      $region40: #{tpu_custom_call.1} parent=5 // pred_fallthru
        _
      %p396 = scmp.le.s32.totalorder 1, %s30
      %p397 = scmp.lt.s32.totalorder %s30, 3
      %p398 = pnand %p396, %p397
      %p399 = pneg %p398
      // Predicated region
      $region49: #{tpu_custom_call.1} parent=5 // pred_check
        _
      $region50: #{tpu_custom_call.1} parent=5 // pred_check_branch
        %401 = sbr.rel (%p398) target = $region52
      $region51: #{tpu_custom_call.1} parent=5 // pred_region
        %s402 = ssub.s32 %s30, 1
        %s403 = sand.u32 %s43, 1
        %s404 = scalar_lea.sflag [#allocation3], %s403
        %s405 = sand.u32 %s43, 1
        %s406 = smul.addr %s405, 128
        %s407 = scalar_lea.vmem [#allocation2], %s406
        // Predicated region
        $region53: #{tpu_custom_call.1} parent=51 // pred_check
          %p408 = pneg %p56
        $region54: #{tpu_custom_call.1} parent=51 // pred_check_branch
          %410 = sbr.rel (%p408) target = $region56
        $region55: #{tpu_custom_call.1} parent=51 // pred_region
          %411 = dma.done %s404, 2048
        $region56: #{tpu_custom_call.1} parent=51 // pred_fallthru
          _
        %s412 = sand.u32 %s35, 1
        %s413 = scalar_lea.sflag [#allocation6], %s412
        %s414 = sand.u32 %s69, 1
        %s415 = smul.addr %s414, 256
        %s416 = scalar_lea.vmem [#allocation5], %s415
        // Predicated region
        $region57: #{tpu_custom_call.1} parent=51 // pred_check
          %p417 = pneg %p82
        $region58: #{tpu_custom_call.1} parent=51 // pred_check_branch
          %419 = sbr.rel (%p417) target = $region60
        $region59: #{tpu_custom_call.1} parent=51 // pred_region
          %420 = dma.done %s413, 4096
        $region60: #{tpu_custom_call.1} parent=51 // pred_fallthru
          _
        // Predicated region
        $region61: #{tpu_custom_call.1} parent=51 // pred_check
          %p421 = pneg %p103
        $region62: #{tpu_custom_call.1} parent=51 // pred_check_branch
          %423 = sbr.rel (%p421) target = $region64
        $region63: #{tpu_custom_call.1} parent=51 // pred_region
          %424 = dma.done [#allocation6], 1024
        $region64: #{tpu_custom_call.1} parent=51 // pred_fallthru
          _
        // Predicated region
        $region65: #{tpu_custom_call.1} parent=51 // pred_check
          %p425 = pneg %p145
        $region66: #{tpu_custom_call.1} parent=51 // pred_check_branch
          %427 = sbr.rel (%p425) target = $region68
        $region67: #{tpu_custom_call.1} parent=51 // pred_region
          %428 = dma.done [#allocation9], 2048
        $region68: #{tpu_custom_call.1} parent=51 // pred_fallthru
          _
        // Predicated region
        $region69: #{tpu_custom_call.1} parent=51 // pred_check
          %p429 = pneg %p187
        $region70: #{tpu_custom_call.1} parent=51 // pred_check_branch
          %431 = sbr.rel (%p429) target = $region72
        $region71: #{tpu_custom_call.1} parent=51 // pred_region
          %432 = dma.done [#allocation9], 2048
        $region72: #{tpu_custom_call.1} parent=51 // pred_fallthru
          _
        %s433 = sand.u32 %s43, 1
        %s434 = scalar_lea.sflag [#allocation3], %s433
        %s435 = sand.u32 %s43, 1
        %s436 = smul.addr %s435, 128
        %s437 = scalar_lea.vmem [#allocation2], %s436
        %p438 = pneg %p56
        %p439 = pneg %p53
        %s440 = sand.u32 %s35, 1
        %s441 = scalar_lea.sflag [#allocation6], %s440
        %s442 = sand.u32 %s69, 1
        %s443 = smul.addr %s442, 256
        %s444 = scalar_lea.vmem [#allocation5], %s443
        %p445 = pneg %p82
        %p446 = pneg %p79
        %p447 = pneg %p103
        %p448 = pneg %p100
        %p449 = pneg %p124
        %p450 = pneg %p121
        %p451 = pneg %p145
        %p452 = pneg %p142
        %p453 = pneg %p166
        %p454 = pneg %p163
        %p455 = pneg %p187
        %p456 = pneg %p184
        %p457 = pneg %p208
        %p458 = pneg %p205
        %p459 = pneg %p234
        %p460 = pneg %p231
        %s461 = sand.u32 %s221, 1
        %s462 = scalar_lea.sflag [#allocation4], %s461
        %s463 = sand.u32 %s221, 1
        %s464 = smul.addr %s463, 512
        %s465 = scalar_lea.vmem [#allocation11], %s464
        %p466 = pneg %p260
        %p467 = pneg %p257
        %s468 = sand.u32 %s35, 1
        %s469 = scalar_lea.sflag [#allocation13], %s468
        %s470 = sand.u32 %s247, 1
        %s471 = smul.addr %s470, 256
        %s472 = scalar_lea.vmem [#allocation12], %s471
        %p473 = pneg %p286
        %p474 = pneg %p283
        %s475 = sand.u32 %s35, 1
        %s476 = scalar_lea.sflag [#allocation13], %s475
        %s477 = sand.u32 %s273, 1
        %s478 = smul.addr %s477, 256
        %s479 = scalar_lea.vmem [#allocation14], %s478
        %s480 = smul.u32 32, %s35
        %s481 = smul.u32 32, %s35
        %s482 = smul.u32 32, %s35
        %s483 = smul.u32 32, %s35
        %s484 = smul.u32 32, %s35
        %v486 = vld [vmem:[%s407] sm:$0xf]
        %v487 = vld [vmem:[%s407 + $0x4] sm:$0xf]
        %v488 = vld [vmem:[%s407 + $0x8] sm:$0xf]
        %v489 = vld [vmem:[%s407 + $0xc] sm:$0xf]
        %v490 = vld [vmem:[%s407 + $0x10] sm:$0xf]
        %v491 = vld [vmem:[%s407 + $0x14] sm:$0xf]
        %v492 = vld [vmem:[%s407 + $0x18] sm:$0xf]
        %v493 = vld [vmem:[%s407 + $0x1c] sm:$0xf]
        %v494 = vld [vmem:[%s407 + $0x20] sm:$0xf]
        %v495 = vld [vmem:[%s407 + $0x24] sm:$0xf]
        %v496 = vld [vmem:[%s407 + $0x28] sm:$0xf]
        %v497 = vld [vmem:[%s407 + $0x2c] sm:$0xf]
        %v498 = vld [vmem:[%s407 + $0x30] sm:$0xf]
        %v499 = vld [vmem:[%s407 + $0x34] sm:$0xf]
        %v500 = vld [vmem:[%s407 + $0x38] sm:$0xf]
        %v501 = vld [vmem:[%s407 + $0x3c] sm:$0xf]
        %v502 = vld [vmem:[%s407 + $0x40] sm:$0xf]
        %v503 = vld [vmem:[%s407 + $0x44] sm:$0xf]
        %v504 = vld [vmem:[%s407 + $0x48] sm:$0xf]
        %v505 = vld [vmem:[%s407 + $0x4c] sm:$0xf]
        %v506 = vld [vmem:[%s407 + $0x50] sm:$0xf]
        %v507 = vld [vmem:[%s407 + $0x54] sm:$0xf]
        %v508 = vld [vmem:[%s407 + $0x58] sm:$0xf]
        %v509 = vld [vmem:[%s407 + $0x5c] sm:$0xf]
        %v510 = vld [vmem:[%s407 + $0x60] sm:$0xf]
        %v511 = vld [vmem:[%s407 + $0x64] sm:$0xf]
        %v512 = vld [vmem:[%s407 + $0x68] sm:$0xf]
        %v513 = vld [vmem:[%s407 + $0x6c] sm:$0xf]
        %v514 = vld [vmem:[%s407 + $0x70] sm:$0xf]
        %v515 = vld [vmem:[%s407 + $0x74] sm:$0xf]
        %v516 = vld [vmem:[%s407 + $0x78] sm:$0xf]
        %v517 = vld [vmem:[%s407 + $0x7c] sm:$0xf]
        %v518 = vld [vmem:[#allocation7] sm:$0xf]
        %v519 = vld [vmem:[#allocation7 + $0x4] sm:$0xf]
        %v520 = vld [vmem:[#allocation7 + $0x8] sm:$0xf]
        %v521 = vld [vmem:[#allocation7 + $0xc] sm:$0xf]
        %v522 = vld [vmem:[#allocation7 + $0x10] sm:$0xf]
        %v523 = vld [vmem:[#allocation7 + $0x14] sm:$0xf]
        %v524 = vld [vmem:[#allocation7 + $0x18] sm:$0xf]
        %v525 = vld [vmem:[#allocation7 + $0x1c] sm:$0xf]
        %v526 = vld [vmem:[#allocation7 + $0x20] sm:$0xf]
        %v527 = vld [vmem:[#allocation7 + $0x24] sm:$0xf]
        %v528 = vld [vmem:[#allocation7 + $0x28] sm:$0xf]
        %v529 = vld [vmem:[#allocation7 + $0x2c] sm:$0xf]
        %v530 = vld [vmem:[#allocation7 + $0x30] sm:$0xf]
        %v531 = vld [vmem:[#allocation7 + $0x34] sm:$0xf]
        %v532 = vld [vmem:[#allocation7 + $0x38] sm:$0xf]
        %v533 = vld [vmem:[#allocation7 + $0x3c] sm:$0xf]
        %v534 = vld [vmem:[%s3] sm:$0x1]
        %v536 = vlaneseq
        %v537 = vshrl.u32 %v536, 7
        %v538 = vsub.s32 0, %v537
        %v539 = vrot.slane %v534, %v538
        %v573 = vunpack.c.l.b16 %v486
        %v574 = vunpack.c.l.b16 %v487
        %v575 = vunpack.c.l.b16 %v488
        %v576 = vunpack.c.l.b16 %v489
        %v577 = vunpack.c.l.b16 %v490
        %v578 = vunpack.c.l.b16 %v491
        %v579 = vunpack.c.l.b16 %v492
        %v580 = vunpack.c.l.b16 %v493
        %v581 = vunpack.c.l.b16 %v494
        %v582 = vunpack.c.l.b16 %v495
        %v583 = vunpack.c.l.b16 %v496
        %v584 = vunpack.c.l.b16 %v497
        %v585 = vunpack.c.l.b16 %v498
        %v586 = vunpack.c.l.b16 %v499
        %v587 = vunpack.c.l.b16 %v500
        %v588 = vunpack.c.l.b16 %v501
        %v589 = vunpack.c.l.b16 %v502
        %v590 = vunpack.c.l.b16 %v503
        %v591 = vunpack.c.l.b16 %v504
        %v592 = vunpack.c.l.b16 %v505
        %v593 = vunpack.c.l.b16 %v506
        %v594 = vunpack.c.l.b16 %v507
        %v595 = vunpack.c.l.b16 %v508
        %v596 = vunpack.c.l.b16 %v509
        %v597 = vunpack.c.l.b16 %v510
        %v598 = vunpack.c.l.b16 %v511
        %v599 = vunpack.c.l.b16 %v512
        %v600 = vunpack.c.l.b16 %v513
        %v601 = vunpack.c.l.b16 %v514
        %v602 = vunpack.c.l.b16 %v515
        %v603 = vunpack.c.l.b16 %v516
        %v604 = vunpack.c.l.b16 %v517
        %v605 = vpack.c.b16 %v574, %v573
        %v606 = vpack.c.b16 %v576, %v575
        %v607 = vpack.c.b16 %v578, %v577
        %v608 = vpack.c.b16 %v580, %v579
        %v609 = vpack.c.b16 %v582, %v581
        %v610 = vpack.c.b16 %v584, %v583
        %v611 = vpack.c.b16 %v586, %v585
        %v612 = vpack.c.b16 %v588, %v587
        %v613 = vpack.c.b16 %v590, %v589
        %v614 = vpack.c.b16 %v592, %v591
        %v615 = vpack.c.b16 %v594, %v593
        %v616 = vpack.c.b16 %v596, %v595
        %v617 = vpack.c.b16 %v598, %v597
        %v618 = vpack.c.b16 %v600, %v599
        %v619 = vpack.c.b16 %v602, %v601
        %v620 = vpack.c.b16 %v604, %v603
        %v653 = vunpack.c.l.b16 %v518
        %v654 = vunpack.c.l.b16 %v519
        %v655 = vunpack.c.l.b16 %v520
        %v656 = vunpack.c.l.b16 %v521
        %v657 = vunpack.c.l.b16 %v522
        %v658 = vunpack.c.l.b16 %v523
        %v659 = vunpack.c.l.b16 %v524
        %v660 = vunpack.c.l.b16 %v525
        %v661 = vunpack.c.l.b16 %v526
        %v662 = vunpack.c.l.b16 %v527
        %v663 = vunpack.c.l.b16 %v528
        %v664 = vunpack.c.l.b16 %v529
        %v665 = vunpack.c.l.b16 %v530
        %v666 = vunpack.c.l.b16 %v531
        %v667 = vunpack.c.l.b16 %v532
        %v668 = vunpack.c.l.b16 %v533
        %v669 = vpack.c.b16 %v654, %v653
        %v670 = vpack.c.b16 %v656, %v655
        %v671 = vpack.c.b16 %v658, %v657
        %v672 = vpack.c.b16 %v660, %v659
        %v673 = vpack.c.b16 %v662, %v661
        %v674 = vpack.c.b16 %v664, %v663
        %v675 = vpack.c.b16 %v666, %v665
        %v676 = vpack.c.b16 %v668, %v667
        %685 = vmatprep.subr.bf16.mxu0 0
        %686 = vmatpush1.bf16.msra.mxu0 %v669
        %687 = vmatprep.subr.bf16.mxu0 0
        %688 = vmatpush1.bf16.msra.mxu0 %v670
        %689 = vmatprep.subr.bf16.mxu0 0
        %690 = vmatpush1.bf16.msra.mxu0 %v671
        %691 = vmatprep.subr.bf16.mxu0 0
        %692 = vmatpush1.bf16.msra.mxu0 %v672
        %693 = vmatprep.subr.bf16.mxu0 0
        %694 = vmatpush1.bf16.msra.mxu0 %v673
        %695 = vmatprep.subr.bf16.mxu0 0
        %696 = vmatpush1.bf16.msra.mxu0 %v674
        %697 = vmatprep.subr.bf16.mxu0 0
        %698 = vmatpush1.bf16.msra.mxu0 %v675
        %699 = vmatprep.subr.bf16.mxu0 0
        %700 = vmatpush1.bf16.msra.mxu0 %v676
        %701 = vmatprep.subr.bf16.mxu0 0
        %702 = vmatpush1.bf16.msra.mxu0 0
        %703 = vmatprep.subr.bf16.mxu0 0
        %704 = vmatpush1.bf16.msra.mxu0 0
        %705 = vmatprep.subr.bf16.mxu0 0
        %706 = vmatpush1.bf16.msra.mxu0 0
        %707 = vmatprep.subr.bf16.mxu0 0
        %708 = vmatpush1.bf16.msra.mxu0 0
        %709 = vmatprep.subr.bf16.mxu0 0
        %710 = vmatpush1.bf16.msra.mxu0 0
        %711 = vmatprep.subr.bf16.mxu0 0
        %712 = vmatpush1.bf16.msra.mxu0 0
        %713 = vmatprep.subr.bf16.mxu0 0
        %714 = vmatpush1.bf16.msra.mxu0 0
        %715 = vmatprep.subr.bf16.mxu0 0
        %716 = vmatpush1.bf16.msra.mxu0 0
        %717 = vmatprep.mubr.bf16.mxu0 0
        %718 = vmatmul.mubr.bf16.gmra.mrb[0].mxu0 %v605
        %v719 = vpop.f32.mrb[0].mxu0
        %v720 = vadd.f32 %v539, %v719
        %v721 = vpop.f32.mrb[0].mxu0
        %v722 = vpop.f32.mrb[0].mxu0
        %v723 = vadd.f32 %v539, %v722
        %v724 = vpop.f32.mrb[0].mxu0
        %725 = vmatprep.mubr.bf16.mxu0 0
        %726 = vmatmul.mubr.bf16.gmra.mrb[0].mxu0 %v606
        %v727 = vpop.f32.mrb[0].mxu0
        %v728 = vadd.f32 %v539, %v727
        %v729 = vpop.f32.mrb[0].mxu0
        %v730 = vpop.f32.mrb[0].mxu0
        %v731 = vadd.f32 %v539, %v730
        %v732 = vpop.f32.mrb[0].mxu0
        %733 = vmatprep.mubr.bf16.mxu0 0
        %734 = vmatmul.mubr.bf16.gmra.mrb[0].mxu0 %v607
        %v735 = vpop.f32.mrb[0].mxu0
        %v736 = vadd.f32 %v539, %v735
        %v737 = vpop.f32.mrb[0].mxu0
        %v738 = vpop.f32.mrb[0].mxu0
        %v739 = vadd.f32 %v539, %v738
        %v740 = vpop.f32.mrb[0].mxu0
        %741 = vmatprep.mubr.bf16.mxu0 0
        %742 = vmatmul.mubr.bf16.gmra.mrb[0].mxu0 %v608
        %v743 = vpop.f32.mrb[0].mxu0
        %v744 = vadd.f32 %v539, %v743
        %v745 = vpop.f32.mrb[0].mxu0
        %v746 = vpop.f32.mrb[0].mxu0
        %v747 = vadd.f32 %v539, %v746
        %v748 = vpop.f32.mrb[0].mxu0
        %749 = vmatprep.mubr.bf16.mxu0 0
        %750 = vmatmul.mubr.bf16.gmra.mrb[0].mxu0 %v609
        %v751 = vpop.f32.mrb[0].mxu0
        %v752 = vadd.f32 %v539, %v751
        %v753 = vpop.f32.mrb[0].mxu0
        %v754 = vpop.f32.mrb[0].mxu0
        %v755 = vadd.f32 %v539, %v754
        %v756 = vpop.f32.mrb[0].mxu0
        %757 = vmatprep.mubr.bf16.mxu0 0
        %758 = vmatmul.mubr.bf16.gmra.mrb[0].mxu0 %v610
        %v759 = vpop.f32.mrb[0].mxu0
        %v760 = vadd.f32 %v539, %v759
        %v761 = vpop.f32.mrb[0].mxu0
        %v762 = vpop.f32.mrb[0].mxu0
        %v763 = vadd.f32 %v539, %v762
        %v764 = vpop.f32.mrb[0].mxu0
        %765 = vmatprep.mubr.bf16.mxu0 0
        %766 = vmatmul.mubr.bf16.gmra.mrb[0].mxu0 %v611
        %v767 = vpop.f32.mrb[0].mxu0
        %v768 = vadd.f32 %v539, %v767
        %v769 = vpop.f32.mrb[0].mxu0
        %v770 = vpop.f32.mrb[0].mxu0
        %v771 = vadd.f32 %v539, %v770
        %v772 = vpop.f32.mrb[0].mxu0
        %773 = vmatprep.mubr.bf16.mxu0 0
        %774 = vmatmul.mubr.bf16.gmra.mrb[0].mxu0 %v612
        %v775 = vpop.f32.mrb[0].mxu0
        %v776 = vadd.f32 %v539, %v775
        %v777 = vpop.f32.mrb[0].mxu0
        %v778 = vpop.f32.mrb[0].mxu0
        %v779 = vadd.f32 %v539, %v778
        %v780 = vpop.f32.mrb[0].mxu0
        %781 = vmatprep.mubr.bf16.mxu0 0
        %782 = vmatmul.mubr.bf16.gmra.mrb[0].mxu0 %v613
        %v783 = vpop.f32.mrb[0].mxu0
        %v784 = vadd.f32 %v539, %v783
        %v785 = vpop.f32.mrb[0].mxu0
        %v786 = vpop.f32.mrb[0].mxu0
        %v787 = vadd.f32 %v539, %v786
        %v788 = vpop.f32.mrb[0].mxu0
        %789 = vmatprep.mubr.bf16.mxu0 0
        %790 = vmatmul.mubr.bf16.gmra.mrb[0].mxu0 %v614
        %v791 = vpop.f32.mrb[0].mxu0
        %v792 = vadd.f32 %v539, %v791
        %v793 = vpop.f32.mrb[0].mxu0
        %v794 = vpop.f32.mrb[0].mxu0
        %v795 = vadd.f32 %v539, %v794
        %v796 = vpop.f32.mrb[0].mxu0
        %797 = vmatprep.mubr.bf16.mxu0 0
        %798 = vmatmul.mubr.bf16.gmra.mrb[0].mxu0 %v615
        %v799 = vpop.f32.mrb[0].mxu0
        %v800 = vadd.f32 %v539, %v799
        %v801 = vpop.f32.mrb[0].mxu0
        %v802 = vpop.f32.mrb[0].mxu0
        %v803 = vadd.f32 %v539, %v802
        %v804 = vpop.f32.mrb[0].mxu0
        %805 = vmatprep.mubr.bf16.mxu0 0
        %806 = vmatmul.mubr.bf16.gmra.mrb[0].mxu0 %v616
        %v807 = vpop.f32.mrb[0].mxu0
        %v808 = vadd.f32 %v539, %v807
        %v809 = vpop.f32.mrb[0].mxu0
        %v810 = vpop.f32.mrb[0].mxu0
        %v811 = vadd.f32 %v539, %v810
        %v812 = vpop.f32.mrb[0].mxu0
        %813 = vmatprep.mubr.bf16.mxu0 0
        %814 = vmatmul.mubr.bf16.gmra.mrb[0].mxu0 %v617
        %v815 = vpop.f32.mrb[0].mxu0
        %v816 = vadd.f32 %v539, %v815
        %v817 = vpop.f32.mrb[0].mxu0
        %v818 = vpop.f32.mrb[0].mxu0
        %v819 = vadd.f32 %v539, %v818
        %v820 = vpop.f32.mrb[0].mxu0
        %821 = vmatprep.mubr.bf16.mxu0 0
        %822 = vmatmul.mubr.bf16.gmra.mrb[0].mxu0 %v618
        %v823 = vpop.f32.mrb[0].mxu0
        %v824 = vadd.f32 %v539, %v823
        %v825 = vpop.f32.mrb[0].mxu0
        %v826 = vpop.f32.mrb[0].mxu0
        %v827 = vadd.f32 %v539, %v826
        %v828 = vpop.f32.mrb[0].mxu0
        %829 = vmatprep.mubr.bf16.mxu0 0
        %830 = vmatmul.mubr.bf16.gmra.mrb[0].mxu0 %v619
        %v831 = vpop.f32.mrb[0].mxu0
        %v832 = vadd.f32 %v539, %v831
        %v833 = vpop.f32.mrb[0].mxu0
        %v834 = vpop.f32.mrb[0].mxu0
        %v835 = vadd.f32 %v539, %v834
        %v836 = vpop.f32.mrb[0].mxu0
        %837 = vmatprep.mubr.bf16.mxu0 0
        %838 = vmatmul.mubr.bf16.gmra.mrb[0].mxu0 %v620
        %v839 = vpop.f32.mrb[0].mxu0
        %v840 = vadd.f32 %v539, %v839
        %v841 = vpop.f32.mrb[0].mxu0
        %v842 = vpop.f32.mrb[0].mxu0
        %v843 = vadd.f32 %v539, %v842
        %v844 = vpop.f32.mrb[0].mxu0
        %845 = vdwg.mxu0
        %v846 = vld [vmem:[%s416] sm:$0xff]
        %v847 = vld [vmem:[%s416 + $0x8] sm:$0xff]
        %v848 = vld [vmem:[%s416 + $0x10] sm:$0xff]
        %v849 = vld [vmem:[%s416 + $0x18] sm:$0xff]
        %v850 = vld [vmem:[%s416 + $0x20] sm:$0xff]
        %v851 = vld [vmem:[%s416 + $0x28] sm:$0xff]
        %v852 = vld [vmem:[%s416 + $0x30] sm:$0xff]
        %v853 = vld [vmem:[%s416 + $0x38] sm:$0xff]
        %v854 = vld [vmem:[%s416 + $0x40] sm:$0xff]
        %v855 = vld [vmem:[%s416 + $0x48] sm:$0xff]
        %v856 = vld [vmem:[%s416 + $0x50] sm:$0xff]
        %v857 = vld [vmem:[%s416 + $0x58] sm:$0xff]
        %v858 = vld [vmem:[%s416 + $0x60] sm:$0xff]
        %v859 = vld [vmem:[%s416 + $0x68] sm:$0xff]
        %v860 = vld [vmem:[%s416 + $0x70] sm:$0xff]
        %v861 = vld [vmem:[%s416 + $0x78] sm:$0xff]
        %v862 = vld [vmem:[%s416 + $0x80] sm:$0xff]
        %v863 = vld [vmem:[%s416 + $0x88] sm:$0xff]
        %v864 = vld [vmem:[%s416 + $0x90] sm:$0xff]
        %v865 = vld [vmem:[%s416 + $0x98] sm:$0xff]
        %v866 = vld [vmem:[%s416 + $0xa0] sm:$0xff]
        %v867 = vld [vmem:[%s416 + $0xa8] sm:$0xff]
        %v868 = vld [vmem:[%s416 + $0xb0] sm:$0xff]
        %v869 = vld [vmem:[%s416 + $0xb8] sm:$0xff]
        %v870 = vld [vmem:[%s416 + $0xc0] sm:$0xff]
        %v871 = vld [vmem:[%s416 + $0xc8] sm:$0xff]
        %v872 = vld [vmem:[%s416 + $0xd0] sm:$0xff]
        %v873 = vld [vmem:[%s416 + $0xd8] sm:$0xff]
        %v874 = vld [vmem:[%s416 + $0xe0] sm:$0xff]
        %v875 = vld [vmem:[%s416 + $0xe8] sm:$0xff]
        %v876 = vld [vmem:[%s416 + $0xf0] sm:$0xff]
        %v877 = vld [vmem:[%s416 + $0xf8] sm:$0xff]
        %v878 = vld [vmem:[#allocation8] sm:$0xf]
        %v879 = vld [vmem:[#allocation8 + $0x4] sm:$0xf]
        %v880 = vld [vmem:[#allocation8 + $0x8] sm:$0xf]
        %v881 = vld [vmem:[#allocation8 + $0xc] sm:$0xf]
        %v882 = vld [vmem:[#allocation8 + $0x10] sm:$0xf]
        %v883 = vld [vmem:[#allocation8 + $0x14] sm:$0xf]
        %v884 = vld [vmem:[#allocation8 + $0x18] sm:$0xf]
        %v885 = vld [vmem:[#allocation8 + $0x1c] sm:$0xf]
        %v886 = vld [vmem:[#allocation8 + $0x20] sm:$0xf]
        %v887 = vld [vmem:[#allocation8 + $0x24] sm:$0xf]
        %v888 = vld [vmem:[#allocation8 + $0x28] sm:$0xf]
        %v889 = vld [vmem:[#allocation8 + $0x2c] sm:$0xf]
        %v890 = vld [vmem:[#allocation8 + $0x30] sm:$0xf]
        %v891 = vld [vmem:[#allocation8 + $0x34] sm:$0xf]
        %v892 = vld [vmem:[#allocation8 + $0x38] sm:$0xf]
        %v893 = vld [vmem:[#allocation8 + $0x3c] sm:$0xf]
        %v894 = vld [vmem:[#allocation8 + $0x40] sm:$0xf]
        %v895 = vld [vmem:[#allocation8 + $0x44] sm:$0xf]
        %v896 = vld [vmem:[#allocation8 + $0x48] sm:$0xf]
        %v897 = vld [vmem:[#allocation8 + $0x4c] sm:$0xf]
        %v898 = vld [vmem:[#allocation8 + $0x50] sm:$0xf]
        %v899 = vld [vmem:[#allocation8 + $0x54] sm:$0xf]
        %v900 = vld [vmem:[#allocation8 + $0x58] sm:$0xf]
        %v901 = vld [vmem:[#allocation8 + $0x5c] sm:$0xf]
        %v902 = vld [vmem:[#allocation8 + $0x60] sm:$0xf]
        %v903 = vld [vmem:[#allocation8 + $0x64] sm:$0xf]
        %v904 = vld [vmem:[#allocation8 + $0x68] sm:$0xf]
        %v905 = vld [vmem:[#allocation8 + $0x6c] sm:$0xf]
        %v906 = vld [vmem:[#allocation8 + $0x70] sm:$0xf]
        %v907 = vld [vmem:[#allocation8 + $0x74] sm:$0xf]
        %v908 = vld [vmem:[#allocation8 + $0x78] sm:$0xf]
        %v909 = vld [vmem:[#allocation8 + $0x7c] sm:$0xf]
        %v910 = vld [vmem:[%s5] sm:$0x1]
        %v912 = vlaneseq
        %v913 = vshrl.u32 %v912, 7
        %v914 = vsub.s32 0, %v913
        %v915 = vrot.slane %v910, %v914
        %v949 = vunpack.c.l.b16 %v846
        %v950 = vunpack.c.h.b16 %v846
        %v951 = vunpack.c.l.b16 %v847
        %v952 = vunpack.c.h.b16 %v847
        %v953 = vunpack.c.l.b16 %v848
        %v954 = vunpack.c.h.b16 %v848
        %v955 = vunpack.c.l.b16 %v849
        %v956 = vunpack.c.h.b16 %v849
        %v957 = vunpack.c.l.b16 %v850
        %v958 = vunpack.c.h.b16 %v850
        %v959 = vunpack.c.l.b16 %v851
        %v960 = vunpack.c.h.b16 %v851
        %v961 = vunpack.c.l.b16 %v852
        %v962 = vunpack.c.h.b16 %v852
        %v963 = vunpack.c.l.b16 %v853
        %v964 = vunpack.c.h.b16 %v853
        %v965 = vunpack.c.l.b16 %v854
        %v966 = vunpack.c.h.b16 %v854
        %v967 = vunpack.c.l.b16 %v855
        %v968 = vunpack.c.h.b16 %v855
        %v969 = vunpack.c.l.b16 %v856
        %v970 = vunpack.c.h.b16 %v856
        %v971 = vunpack.c.l.b16 %v857
        %v972 = vunpack.c.h.b16 %v857
        %v973 = vunpack.c.l.b16 %v858
        %v974 = vunpack.c.h.b16 %v858
        %v975 = vunpack.c.l.b16 %v859
        %v976 = vunpack.c.h.b16 %v859
        %v977 = vunpack.c.l.b16 %v860
        %v978 = vunpack.c.h.b16 %v860
        %v979 = vunpack.c.l.b16 %v861
        %v980 = vunpack.c.h.b16 %v861
        %v981 = vunpack.c.l.b16 %v862
        %v982 = vunpack.c.h.b16 %v862
        %v983 = vunpack.c.l.b16 %v863
        %v984 = vunpack.c.h.b16 %v863
        %v985 = vunpack.c.l.b16 %v864
        %v986 = vunpack.c.h.b16 %v864
        %v987 = vunpack.c.l.b16 %v865
        %v988 = vunpack.c.h.b16 %v865
        %v989 = vunpack.c.l.b16 %v866
        %v990 = vunpack.c.h.b16 %v866
        %v991 = vunpack.c.l.b16 %v867
        %v992 = vunpack.c.h.b16 %v867
        %v993 = vunpack.c.l.b16 %v868
        %v994 = vunpack.c.h.b16 %v868
        %v995 = vunpack.c.l.b16 %v869
        %v996 = vunpack.c.h.b16 %v869
        %v997 = vunpack.c.l.b16 %v870
        %v998 = vunpack.c.h.b16 %v870
        %v999 = vunpack.c.l.b16 %v871
        %v1000 = vunpack.c.h.b16 %v871
        %v1001 = vunpack.c.l.b16 %v872
        %v1002 = vunpack.c.h.b16 %v872
        %v1003 = vunpack.c.l.b16 %v873
        %v1004 = vunpack.c.h.b16 %v873
        %v1005 = vunpack.c.l.b16 %v874
        %v1006 = vunpack.c.h.b16 %v874
        %v1007 = vunpack.c.l.b16 %v875
        %v1008 = vunpack.c.h.b16 %v875
        %v1009 = vunpack.c.l.b16 %v876
        %v1010 = vunpack.c.h.b16 %v876
        %v1011 = vunpack.c.l.b16 %v877
        %v1012 = vunpack.c.h.b16 %v877
        %v1013 = vpack.c.b16 %v951, %v949
        %v1014 = vpack.c.b16 %v952, %v950
        %v1015 = vpack.c.b16 %v955, %v953
        %v1016 = vpack.c.b16 %v956, %v954
        %v1017 = vpack.c.b16 %v959, %v957
        %v1018 = vpack.c.b16 %v960, %v958
        %v1019 = vpack.c.b16 %v963, %v961
        %v1020 = vpack.c.b16 %v964, %v962
        %v1021 = vpack.c.b16 %v967, %v965
        %v1022 = vpack.c.b16 %v968, %v966
        %v1023 = vpack.c.b16 %v971, %v969
        %v1024 = vpack.c.b16 %v972, %v970
        %v1025 = vpack.c.b16 %v975, %v973
        %v1026 = vpack.c.b16 %v976, %v974
        %v1027 = vpack.c.b16 %v979, %v977
        %v1028 = vpack.c.b16 %v980, %v978
        %v1029 = vpack.c.b16 %v983, %v981
        %v1030 = vpack.c.b16 %v984, %v982
        %v1031 = vpack.c.b16 %v987, %v985
        %v1032 = vpack.c.b16 %v988, %v986
        %v1033 = vpack.c.b16 %v991, %v989
        %v1034 = vpack.c.b16 %v992, %v990
        %v1035 = vpack.c.b16 %v995, %v993
        %v1036 = vpack.c.b16 %v996, %v994
        %v1037 = vpack.c.b16 %v999, %v997
        %v1038 = vpack.c.b16 %v1000, %v998
        %v1039 = vpack.c.b16 %v1003, %v1001
        %v1040 = vpack.c.b16 %v1004, %v1002
        %v1041 = vpack.c.b16 %v1007, %v1005
        %v1042 = vpack.c.b16 %v1008, %v1006
        %v1043 = vpack.c.b16 %v1011, %v1009
        %v1044 = vpack.c.b16 %v1012, %v1010
        %v1109 = vunpack.c.l.b16 %v878
        %v1110 = vunpack.c.l.b16 %v879
        %v1111 = vunpack.c.l.b16 %v880
        %v1112 = vunpack.c.l.b16 %v881
        %v1113 = vunpack.c.l.b16 %v882
        %v1114 = vunpack.c.l.b16 %v883
        %v1115 = vunpack.c.l.b16 %v884
        %v1116 = vunpack.c.l.b16 %v885
        %v1117 = vunpack.c.l.b16 %v886
        %v1118 = vunpack.c.l.b16 %v887
        %v1119 = vunpack.c.l.b16 %v888
        %v1120 = vunpack.c.l.b16 %v889
        %v1121 = vunpack.c.l.b16 %v890
        %v1122 = vunpack.c.l.b16 %v891
        %v1123 = vunpack.c.l.b16 %v892
        %v1124 = vunpack.c.l.b16 %v893
        %v1125 = vunpack.c.l.b16 %v894
        %v1126 = vunpack.c.l.b16 %v895
        %v1127 = vunpack.c.l.b16 %v896
        %v1128 = vunpack.c.l.b16 %v897
        %v1129 = vunpack.c.l.b16 %v898
        %v1130 = vunpack.c.l.b16 %v899
        %v1131 = vunpack.c.l.b16 %v900
        %v1132 = vunpack.c.l.b16 %v901
        %v1133 = vunpack.c.l.b16 %v902
        %v1134 = vunpack.c.l.b16 %v903
        %v1135 = vunpack.c.l.b16 %v904
        %v1136 = vunpack.c.l.b16 %v905
        %v1137 = vunpack.c.l.b16 %v906
        %v1138 = vunpack.c.l.b16 %v907
        %v1139 = vunpack.c.l.b16 %v908
        %v1140 = vunpack.c.l.b16 %v909
        %v1141 = vpack.c.b16 %v1110, %v1109
        %v1142 = vpack.c.b16 %v1112, %v1111
        %v1143 = vpack.c.b16 %v1114, %v1113
        %v1144 = vpack.c.b16 %v1116, %v1115
        %v1145 = vpack.c.b16 %v1118, %v1117
        %v1146 = vpack.c.b16 %v1120, %v1119
        %v1147 = vpack.c.b16 %v1122, %v1121
        %v1148 = vpack.c.b16 %v1124, %v1123
        %v1149 = vpack.c.b16 %v1126, %v1125
        %v1150 = vpack.c.b16 %v1128, %v1127
        %v1151 = vpack.c.b16 %v1130, %v1129
        %v1152 = vpack.c.b16 %v1132, %v1131
        %v1153 = vpack.c.b16 %v1134, %v1133
        %v1154 = vpack.c.b16 %v1136, %v1135
        %v1155 = vpack.c.b16 %v1138, %v1137
        %v1156 = vpack.c.b16 %v1140, %v1139
        %1173 = vmatprep.subr.bf16.mxu0 0
        %1174 = vmatpush1.bf16.msra.mxu0 %v1141
        %1175 = vmatprep.subr.bf16.mxu0 0
        %1176 = vmatpush1.bf16.msra.mxu0 %v1142
        %1177 = vmatprep.subr.bf16.mxu0 0
        %1178 = vmatpush1.bf16.msra.mxu0 %v1143
        %1179 = vmatprep.subr.bf16.mxu0 0
        %1180 = vmatpush1.bf16.msra.mxu0 %v1144
        %1181 = vmatprep.subr.bf16.mxu0 0
        %1182 = vmatpush1.bf16.msra.mxu0 %v1145
        %1183 = vmatprep.subr.bf16.mxu0 0
        %1184 = vmatpush1.bf16.msra.mxu0 %v1146
        %1185 = vmatprep.subr.bf16.mxu0 0
        %1186 = vmatpush1.bf16.msra.mxu0 %v1147
        %1187 = vmatprep.subr.bf16.mxu0 0
        %1188 = vmatpush1.bf16.msra.mxu0 %v1148
        %1189 = vmatprep.subr.bf16.mxu0 0
        %1190 = vmatpush1.bf16.msra.mxu0 %v1149
        %1191 = vmatprep.subr.bf16.mxu0 0
        %1192 = vmatpush1.bf16.msra.mxu0 %v1150
        %1193 = vmatprep.subr.bf16.mxu0 0
        %1194 = vmatpush1.bf16.msra.mxu0 %v1151
        %1195 = vmatprep.subr.bf16.mxu0 0
        %1196 = vmatpush1.bf16.msra.mxu0 %v1152
        %1197 = vmatprep.subr.bf16.mxu0 0
        %1198 = vmatpush1.bf16.msra.mxu0 %v1153
        %1199 = vmatprep.subr.bf16.mxu0 0
        %1200 = vmatpush1.bf16.msra.mxu0 %v1154
        %1201 = vmatprep.subr.bf16.mxu0 0
        %1202 = vmatpush1.bf16.msra.mxu0 %v1155
        %1203 = vmatprep.subr.bf16.mxu0 0
        %1204 = vmatpush1.bf16.msra.mxu0 %v1156
        %1205 = vmatprep.mubr.bf16.mxu0 %v1014
        %1206 = vmatmul.mubr.bf16.gmra.mrb[0].mxu0 %v1013
        %v1207 = vpop.f32.mrb[0].mxu0
        %v1208 = vadd.f32 %v915, %v1207
        %v1209 = vpop.f32.mrb[0].mxu0
        %v1210 = vpop.f32.mrb[0].mxu0
        %v1211 = vadd.f32 %v915, %v1210
        %v1212 = vpop.f32.mrb[0].mxu0
        %1213 = vmatprep.mubr.bf16.mxu0 %v1016
        %1214 = vmatmul.mubr.bf16.gmra.mrb[0].mxu0 %v1015
        %v1215 = vpop.f32.mrb[0].mxu0
        %v1216 = vadd.f32 %v915, %v1215
        %v1217 = vpop.f32.mrb[0].mxu0
        %v1218 = vpop.f32.mrb[0].mxu0
        %v1219 = vadd.f32 %v915, %v1218
        %v1220 = vpop.f32.mrb[0].mxu0
        %1221 = vmatprep.mubr.bf16.mxu0 %v1018
        %1222 = vmatmul.mubr.bf16.gmra.mrb[0].mxu0 %v1017
        %v1223 = vpop.f32.mrb[0].mxu0
        %v1224 = vadd.f32 %v915, %v1223
        %v1225 = vpop.f32.mrb[0].mxu0
        %v1226 = vpop.f32.mrb[0].mxu0
        %v1227 = vadd.f32 %v915, %v1226
        %v1228 = vpop.f32.mrb[0].mxu0
        %1229 = vmatprep.mubr.bf16.mxu0 %v1020
        %1230 = vmatmul.mubr.bf16.gmra.mrb[0].mxu0 %v1019
        %v1231 = vpop.f32.mrb[0].mxu0
        %v1232 = vadd.f32 %v915, %v1231
        %v1233 = vpop.f32.mrb[0].mxu0
        %v1234 = vpop.f32.mrb[0].mxu0
        %v1235 = vadd.f32 %v915, %v1234
        %v1236 = vpop.f32.mrb[0].mxu0
        %1237 = vmatprep.mubr.bf16.mxu0 %v1022
        %1238 = vmatmul.mubr.bf16.gmra.mrb[0].mxu0 %v1021
        %v1239 = vpop.f32.mrb[0].mxu0
        %v1240 = vadd.f32 %v915, %v1239
        %v1241 = vpop.f32.mrb[0].mxu0
        %v1242 = vpop.f32.mrb[0].mxu0
        %v1243 = vadd.f32 %v915, %v1242
        %v1244 = vpop.f32.mrb[0].mxu0
        %1245 = vmatprep.mubr.bf16.mxu0 %v1024
        %1246 = vmatmul.mubr.bf16.gmra.mrb[0].mxu0 %v1023
        %v1247 = vpop.f32.mrb[0].mxu0
        %v1248 = vadd.f32 %v915, %v1247
        %v1249 = vpop.f32.mrb[0].mxu0
        %v1250 = vpop.f32.mrb[0].mxu0
        %v1251 = vadd.f32 %v915, %v1250
        %v1252 = vpop.f32.mrb[0].mxu0
        %1253 = vmatprep.mubr.bf16.mxu0 %v1026
        %1254 = vmatmul.mubr.bf16.gmra.mrb[0].mxu0 %v1025
        %v1255 = vpop.f32.mrb[0].mxu0
        %v1256 = vadd.f32 %v915, %v1255
        %v1257 = vpop.f32.mrb[0].mxu0
        %v1258 = vpop.f32.mrb[0].mxu0
        %v1259 = vadd.f32 %v915, %v1258
        %v1260 = vpop.f32.mrb[0].mxu0
        %1261 = vmatprep.mubr.bf16.mxu0 %v1028
        %1262 = vmatmul.mubr.bf16.gmra.mrb[0].mxu0 %v1027
        %v1263 = vpop.f32.mrb[0].mxu0
        %v1264 = vadd.f32 %v915, %v1263
        %v1265 = vpop.f32.mrb[0].mxu0
        %v1266 = vpop.f32.mrb[0].mxu0
        %v1267 = vadd.f32 %v915, %v1266
        %v1268 = vpop.f32.mrb[0].mxu0
        %1269 = vmatprep.mubr.bf16.mxu0 %v1030
        %1270 = vmatmul.mubr.bf16.gmra.mrb[0].mxu0 %v1029
        %v1271 = vpop.f32.mrb[0].mxu0
        %v1272 = vadd.f32 %v915, %v1271
        %v1273 = vpop.f32.mrb[0].mxu0
        %v1274 = vpop.f32.mrb[0].mxu0
        %v1275 = vadd.f32 %v915, %v1274
        %v1276 = vpop.f32.mrb[0].mxu0
        %1277 = vmatprep.mubr.bf16.mxu0 %v1032
        %1278 = vmatmul.mubr.bf16.gmra.mrb[0].mxu0 %v1031
        %v1279 = vpop.f32.mrb[0].mxu0
        %v1280 = vadd.f32 %v915, %v1279
        %v1281 = vpop.f32.mrb[0].mxu0
        %v1282 = vpop.f32.mrb[0].mxu0
        %v1283 = vadd.f32 %v915, %v1282
        %v1284 = vpop.f32.mrb[0].mxu0
        %1285 = vmatprep.mubr.bf16.mxu0 %v1034
        %1286 = vmatmul.mubr.bf16.gmra.mrb[0].mxu0 %v1033
        %v1287 = vpop.f32.mrb[0].mxu0
        %v1288 = vadd.f32 %v915, %v1287
        %v1289 = vpop.f32.mrb[0].mxu0
        %v1290 = vpop.f32.mrb[0].mxu0
        %v1291 = vadd.f32 %v915, %v1290
        %v1292 = vpop.f32.mrb[0].mxu0
        %1293 = vmatprep.mubr.bf16.mxu0 %v1036
        %1294 = vmatmul.mubr.bf16.gmra.mrb[0].mxu0 %v1035
        %v1295 = vpop.f32.mrb[0].mxu0
        %v1296 = vadd.f32 %v915, %v1295
        %v1297 = vpop.f32.mrb[0].mxu0
        %v1298 = vpop.f32.mrb[0].mxu0
        %v1299 = vadd.f32 %v915, %v1298
        %v1300 = vpop.f32.mrb[0].mxu0
        %1301 = vmatprep.mubr.bf16.mxu0 %v1038
        %1302 = vmatmul.mubr.bf16.gmra.mrb[0].mxu0 %v1037
        %v1303 = vpop.f32.mrb[0].mxu0
        %v1304 = vadd.f32 %v915, %v1303
        %v1305 = vpop.f32.mrb[0].mxu0
        %v1306 = vpop.f32.mrb[0].mxu0
        %v1307 = vadd.f32 %v915, %v1306
        %v1308 = vpop.f32.mrb[0].mxu0
        %1309 = vmatprep.mubr.bf16.mxu0 %v1040
        %1310 = vmatmul.mubr.bf16.gmra.mrb[0].mxu0 %v1039
        %v1311 = vpop.f32.mrb[0].mxu0
        %v1312 = vadd.f32 %v915, %v1311
        %v1313 = vpop.f32.mrb[0].mxu0
        %v1314 = vpop.f32.mrb[0].mxu0
        %v1315 = vadd.f32 %v915, %v1314
        %v1316 = vpop.f32.mrb[0].mxu0
        %1317 = vmatprep.mubr.bf16.mxu0 %v1042
        %1318 = vmatmul.mubr.bf16.gmra.mrb[0].mxu0 %v1041
        %v1319 = vpop.f32.mrb[0].mxu0
        %v1320 = vadd.f32 %v915, %v1319
        %v1321 = vpop.f32.mrb[0].mxu0
        %v1322 = vpop.f32.mrb[0].mxu0
        %v1323 = vadd.f32 %v915, %v1322
        %v1324 = vpop.f32.mrb[0].mxu0
        %1325 = vmatprep.mubr.bf16.mxu0 %v1044
        %1326 = vmatmul.mubr.bf16.gmra.mrb[0].mxu0 %v1043
        %v1327 = vpop.f32.mrb[0].mxu0
        %v1328 = vadd.f32 %v915, %v1327
        %v1329 = vpop.f32.mrb[0].mxu0
        %v1330 = vpop.f32.mrb[0].mxu0
        %v1331 = vadd.f32 %v915, %v1330
        %v1332 = vpop.f32.mrb[0].mxu0
        %1333 = vdwg.mxu0
        %v1334 = vpack.c.bf16 %v1211, %v1208
        %v1335 = vpack.c.bf16 %v1219, %v1216
        %v1336 = vpack.c.bf16 %v1227, %v1224
        %v1337 = vpack.c.bf16 %v1235, %v1232
        %v1338 = vpack.c.bf16 %v1243, %v1240
        %v1339 = vpack.c.bf16 %v1251, %v1248
        %v1340 = vpack.c.bf16 %v1259, %v1256
        %v1341 = vpack.c.bf16 %v1267, %v1264
        %v1342 = vpack.c.bf16 %v1275, %v1272
        %v1343 = vpack.c.bf16 %v1283, %v1280
        %v1344 = vpack.c.bf16 %v1291, %v1288
        %v1345 = vpack.c.bf16 %v1299, %v1296
        %v1346 = vpack.c.bf16 %v1307, %v1304
        %v1347 = vpack.c.bf16 %v1315, %v1312
        %v1348 = vpack.c.bf16 %v1323, %v1320
        %v1349 = vpack.c.bf16 %v1331, %v1328
        %v1350 = vld [vmem:[#allocation10] sm:$0xff]
        %v1351 = vld [vmem:[#allocation10 + $0x8] sm:$0xff]
        %v1352 = vld [vmem:[#allocation10 + $0x10] sm:$0xff]
        %v1353 = vld [vmem:[#allocation10 + $0x18] sm:$0xff]
        %v1354 = vld [vmem:[#allocation10 + $0x20] sm:$0xff]
        %v1355 = vld [vmem:[#allocation10 + $0x28] sm:$0xff]
        %v1356 = vld [vmem:[#allocation10 + $0x30] sm:$0xff]
        %v1357 = vld [vmem:[#allocation10 + $0x38] sm:$0xff]
        %v1358 = vld [vmem:[#allocation10 + $0x40] sm:$0xff]
        %v1359 = vld [vmem:[#allocation10 + $0x48] sm:$0xff]
        %v1360 = vld [vmem:[#allocation10 + $0x50] sm:$0xff]
        %v1361 = vld [vmem:[#allocation10 + $0x58] sm:$0xff]
        %v1362 = vld [vmem:[#allocation10 + $0x60] sm:$0xff]
        %v1363 = vld [vmem:[#allocation10 + $0x68] sm:$0xff]
        %v1364 = vld [vmem:[#allocation10 + $0x70] sm:$0xff]
        %v1365 = vld [vmem:[#allocation10 + $0x78] sm:$0xff]
        %v1366 = vld [vmem:[%s7] sm:$0x3]
        %v1368 = vlaneseq
        %v1369 = vshrl.u32 %v1368, 7
        %v1370 = vsub.s32 0, %v1369
        %v1371 = vrot.slane %v1366, %v1370
        %v1372 = vlaneseq
        %v1373 = vshrl.u32 %v1372, 7
        %v1374 = vsub.s32 1, %v1373
        %v1375 = vrot.slane %v1366, %v1374
        %v1394 = vunpack.c.l.b16 %v1350
        %v1395 = vunpack.c.h.b16 %v1350
        %v1396 = vunpack.c.l.b16 %v1351
        %v1397 = vunpack.c.h.b16 %v1351
        %v1398 = vunpack.c.l.b16 %v1352
        %v1399 = vunpack.c.h.b16 %v1352
        %v1400 = vunpack.c.l.b16 %v1353
        %v1401 = vunpack.c.h.b16 %v1353
        %v1402 = vunpack.c.l.b16 %v1354
        %v1403 = vunpack.c.h.b16 %v1354
        %v1404 = vunpack.c.l.b16 %v1355
        %v1405 = vunpack.c.h.b16 %v1355
        %v1406 = vunpack.c.l.b16 %v1356
        %v1407 = vunpack.c.h.b16 %v1356
        %v1408 = vunpack.c.l.b16 %v1357
        %v1409 = vunpack.c.h.b16 %v1357
        %v1410 = vunpack.c.l.b16 %v1358
        %v1411 = vunpack.c.h.b16 %v1358
        %v1412 = vunpack.c.l.b16 %v1359
        %v1413 = vunpack.c.h.b16 %v1359
        %v1414 = vunpack.c.l.b16 %v1360
        %v1415 = vunpack.c.h.b16 %v1360
        %v1416 = vunpack.c.l.b16 %v1361
        %v1417 = vunpack.c.h.b16 %v1361
        %v1418 = vunpack.c.l.b16 %v1362
        %v1419 = vunpack.c.h.b16 %v1362
        %v1420 = vunpack.c.l.b16 %v1363
        %v1421 = vunpack.c.h.b16 %v1363
        %v1422 = vunpack.c.l.b16 %v1364
        %v1423 = vunpack.c.h.b16 %v1364
        %v1424 = vunpack.c.l.b16 %v1365
        %v1425 = vunpack.c.h.b16 %v1365
        %v1426 = vpack.c.b16 %v1396, %v1394
        %v1427 = vpack.c.b16 %v1397, %v1395
        %v1428 = vpack.c.b16 %v1400, %v1398
        %v1429 = vpack.c.b16 %v1401, %v1399
        %v1430 = vpack.c.b16 %v1404, %v1402
        %v1431 = vpack.c.b16 %v1405, %v1403
        %v1432 = vpack.c.b16 %v1408, %v1406
        %v1433 = vpack.c.b16 %v1409, %v1407
        %v1434 = vpack.c.b16 %v1412, %v1410
        %v1435 = vpack.c.b16 %v1413, %v1411
        %v1436 = vpack.c.b16 %v1416, %v1414
        %v1437 = vpack.c.b16 %v1417, %v1415
        %v1438 = vpack.c.b16 %v1420, %v1418
        %v1439 = vpack.c.b16 %v1421, %v1419
        %v1440 = vpack.c.b16 %v1424, %v1422
        %v1441 = vpack.c.b16 %v1425, %v1423
        %1458 = vmatprep.subr.bf16.mxu0 %v1427
        %1459 = vmatpush1.bf16.msra.mxu0 %v1426
        %1460 = vmatprep.subr.bf16.mxu0 %v1429
        %1461 = vmatpush1.bf16.msra.mxu0 %v1428
        %1462 = vmatprep.subr.bf16.mxu0 %v1431
        %1463 = vmatpush1.bf16.msra.mxu0 %v1430
        %1464 = vmatprep.subr.bf16.mxu0 %v1433
        %1465 = vmatpush1.bf16.msra.mxu0 %v1432
        %1466 = vmatprep.subr.bf16.mxu0 %v1435
        %1467 = vmatpush1.bf16.msra.mxu0 %v1434
        %1468 = vmatprep.subr.bf16.mxu0 %v1437
        %1469 = vmatpush1.bf16.msra.mxu0 %v1436
        %1470 = vmatprep.subr.bf16.mxu0 %v1439
        %1471 = vmatpush1.bf16.msra.mxu0 %v1438
        %1472 = vmatprep.subr.bf16.mxu0 %v1441
        %1473 = vmatpush1.bf16.msra.mxu0 %v1440
        %1474 = vmatprep.subr.bf16.mxu0 0
        %1475 = vmatpush1.bf16.msra.mxu0 0
        %1476 = vmatprep.subr.bf16.mxu0 0
        %1477 = vmatpush1.bf16.msra.mxu0 0
        %1478 = vmatprep.subr.bf16.mxu0 0
        %1479 = vmatpush1.bf16.msra.mxu0 0
        %1480 = vmatprep.subr.bf16.mxu0 0
        %1481 = vmatpush1.bf16.msra.mxu0 0
        %1482 = vmatprep.subr.bf16.mxu0 0
        %1483 = vmatpush1.bf16.msra.mxu0 0
        %1484 = vmatprep.subr.bf16.mxu0 0
        %1485 = vmatpush1.bf16.msra.mxu0 0
        %1486 = vmatprep.subr.bf16.mxu0 0
        %1487 = vmatpush1.bf16.msra.mxu0 0
        %1488 = vmatprep.subr.bf16.mxu0 0
        %1489 = vmatpush1.bf16.msra.mxu0 0
        %1490 = vmatprep.mubr.bf16.mxu0 0
        %1491 = vmatmul.mubr.bf16.gmra.mrb[0].mxu0 %v1334
        %v1492 = vpop.f32.mrb[0].mxu0
        %v1493 = vadd.f32 %v1371, %v1492
        %v1494 = vpop.f32.mrb[0].mxu0
        %v1495 = vadd.f32 %v1375, %v1494
        %v1496 = vpop.f32.mrb[0].mxu0
        %v1497 = vadd.f32 %v1371, %v1496
        %v1498 = vpop.f32.mrb[0].mxu0
        %v1499 = vadd.f32 %v1375, %v1498
        %1500 = vmatprep.mubr.bf16.mxu0 0
        %1501 = vmatmul.mubr.bf16.gmra.mrb[0].mxu0 %v1335
        %v1502 = vpop.f32.mrb[0].mxu0
        %v1503 = vadd.f32 %v1371, %v1502
        %v1504 = vpop.f32.mrb[0].mxu0
        %v1505 = vadd.f32 %v1375, %v1504
        %v1506 = vpop.f32.mrb[0].mxu0
        %v1507 = vadd.f32 %v1371, %v1506
        %v1508 = vpop.f32.mrb[0].mxu0
        %v1509 = vadd.f32 %v1375, %v1508
        %1510 = vmatprep.mubr.bf16.mxu0 0
        %1511 = vmatmul.mubr.bf16.gmra.mrb[0].mxu0 %v1336
        %v1512 = vpop.f32.mrb[0].mxu0
        %v1513 = vadd.f32 %v1371, %v1512
        %v1514 = vpop.f32.mrb[0].mxu0
        %v1515 = vadd.f32 %v1375, %v1514
        %v1516 = vpop.f32.mrb[0].mxu0
        %v1517 = vadd.f32 %v1371, %v1516
        %v1518 = vpop.f32.mrb[0].mxu0
        %v1519 = vadd.f32 %v1375, %v1518
        %1520 = vmatprep.mubr.bf16.mxu0 0
        %1521 = vmatmul.mubr.bf16.gmra.mrb[0].mxu0 %v1337
        %v1522 = vpop.f32.mrb[0].mxu0
        %v1523 = vadd.f32 %v1371, %v1522
        %v1524 = vpop.f32.mrb[0].mxu0
        %v1525 = vadd.f32 %v1375, %v1524
        %v1526 = vpop.f32.mrb[0].mxu0
        %v1527 = vadd.f32 %v1371, %v1526
        %v1528 = vpop.f32.mrb[0].mxu0
        %v1529 = vadd.f32 %v1375, %v1528
        %1530 = vmatprep.mubr.bf16.mxu0 0
        %1531 = vmatmul.mubr.bf16.gmra.mrb[0].mxu0 %v1338
        %v1532 = vpop.f32.mrb[0].mxu0
        %v1533 = vadd.f32 %v1371, %v1532
        %v1534 = vpop.f32.mrb[0].mxu0
        %v1535 = vadd.f32 %v1375, %v1534
        %v1536 = vpop.f32.mrb[0].mxu0
        %v1537 = vadd.f32 %v1371, %v1536
        %v1538 = vpop.f32.mrb[0].mxu0
        %v1539 = vadd.f32 %v1375, %v1538
        %1540 = vmatprep.mubr.bf16.mxu0 0
        %1541 = vmatmul.mubr.bf16.gmra.mrb[0].mxu0 %v1339
        %v1542 = vpop.f32.mrb[0].mxu0
        %v1543 = vadd.f32 %v1371, %v1542
        %v1544 = vpop.f32.mrb[0].mxu0
        %v1545 = vadd.f32 %v1375, %v1544
        %v1546 = vpop.f32.mrb[0].mxu0
        %v1547 = vadd.f32 %v1371, %v1546
        %v1548 = vpop.f32.mrb[0].mxu0
        %v1549 = vadd.f32 %v1375, %v1548
        %1550 = vmatprep.mubr.bf16.mxu0 0
        %1551 = vmatmul.mubr.bf16.gmra.mrb[0].mxu0 %v1340
        %v1552 = vpop.f32.mrb[0].mxu0
        %v1553 = vadd.f32 %v1371, %v1552
        %v1554 = vpop.f32.mrb[0].mxu0
        %v1555 = vadd.f32 %v1375, %v1554
        %v1556 = vpop.f32.mrb[0].mxu0
        %v1557 = vadd.f32 %v1371, %v1556
        %v1558 = vpop.f32.mrb[0].mxu0
        %v1559 = vadd.f32 %v1375, %v1558
        %1560 = vmatprep.mubr.bf16.mxu0 0
        %1561 = vmatmul.mubr.bf16.gmra.mrb[0].mxu0 %v1341
        %v1562 = vpop.f32.mrb[0].mxu0
        %v1563 = vadd.f32 %v1371, %v1562
        %v1564 = vpop.f32.mrb[0].mxu0
        %v1565 = vadd.f32 %v1375, %v1564
        %v1566 = vpop.f32.mrb[0].mxu0
        %v1567 = vadd.f32 %v1371, %v1566
        %v1568 = vpop.f32.mrb[0].mxu0
        %v1569 = vadd.f32 %v1375, %v1568
        %1570 = vmatprep.mubr.bf16.mxu0 0
        %1571 = vmatmul.mubr.bf16.gmra.mrb[0].mxu0 %v1342
        %v1572 = vpop.f32.mrb[0].mxu0
        %v1573 = vadd.f32 %v1371, %v1572
        %v1574 = vpop.f32.mrb[0].mxu0
        %v1575 = vadd.f32 %v1375, %v1574
        %v1576 = vpop.f32.mrb[0].mxu0
        %v1577 = vadd.f32 %v1371, %v1576
        %v1578 = vpop.f32.mrb[0].mxu0
        %v1579 = vadd.f32 %v1375, %v1578
        %1580 = vmatprep.mubr.bf16.mxu0 0
        %1581 = vmatmul.mubr.bf16.gmra.mrb[0].mxu0 %v1343
        %v1582 = vpop.f32.mrb[0].mxu0
        %v1583 = vadd.f32 %v1371, %v1582
        %v1584 = vpop.f32.mrb[0].mxu0
        %v1585 = vadd.f32 %v1375, %v1584
        %v1586 = vpop.f32.mrb[0].mxu0
        %v1587 = vadd.f32 %v1371, %v1586
        %v1588 = vpop.f32.mrb[0].mxu0
        %v1589 = vadd.f32 %v1375, %v1588
        %1590 = vmatprep.mubr.bf16.mxu0 0
        %1591 = vmatmul.mubr.bf16.gmra.mrb[0].mxu0 %v1344
        %v1592 = vpop.f32.mrb[0].mxu0
        %v1593 = vadd.f32 %v1371, %v1592
        %v1594 = vpop.f32.mrb[0].mxu0
        %v1595 = vadd.f32 %v1375, %v1594
        %v1596 = vpop.f32.mrb[0].mxu0
        %v1597 = vadd.f32 %v1371, %v1596
        %v1598 = vpop.f32.mrb[0].mxu0
        %v1599 = vadd.f32 %v1375, %v1598
        %1600 = vmatprep.mubr.bf16.mxu0 0
        %1601 = vmatmul.mubr.bf16.gmra.mrb[0].mxu0 %v1345
        %v1602 = vpop.f32.mrb[0].mxu0
        %v1603 = vadd.f32 %v1371, %v1602
        %v1604 = vpop.f32.mrb[0].mxu0
        %v1605 = vadd.f32 %v1375, %v1604
        %v1606 = vpop.f32.mrb[0].mxu0
        %v1607 = vadd.f32 %v1371, %v1606
        %v1608 = vpop.f32.mrb[0].mxu0
        %v1609 = vadd.f32 %v1375, %v1608
        %1610 = vmatprep.mubr.bf16.mxu0 0
        %1611 = vmatmul.mubr.bf16.gmra.mrb[0].mxu0 %v1346
        %v1612 = vpop.f32.mrb[0].mxu0
        %v1613 = vadd.f32 %v1371, %v1612
        %v1614 = vpop.f32.mrb[0].mxu0
        %v1615 = vadd.f32 %v1375, %v1614
        %v1616 = vpop.f32.mrb[0].mxu0
        %v1617 = vadd.f32 %v1371, %v1616
        %v1618 = vpop.f32.mrb[0].mxu0
        %v1619 = vadd.f32 %v1375, %v1618
        %1620 = vmatprep.mubr.bf16.mxu0 0
        %1621 = vmatmul.mubr.bf16.gmra.mrb[0].mxu0 %v1347
        %v1622 = vpop.f32.mrb[0].mxu0
        %v1623 = vadd.f32 %v1371, %v1622
        %v1624 = vpop.f32.mrb[0].mxu0
        %v1625 = vadd.f32 %v1375, %v1624
        %v1626 = vpop.f32.mrb[0].mxu0
        %v1627 = vadd.f32 %v1371, %v1626
        %v1628 = vpop.f32.mrb[0].mxu0
        %v1629 = vadd.f32 %v1375, %v1628
        %1630 = vmatprep.mubr.bf16.mxu0 0
        %1631 = vmatmul.mubr.bf16.gmra.mrb[0].mxu0 %v1348
        %v1632 = vpop.f32.mrb[0].mxu0
        %v1633 = vadd.f32 %v1371, %v1632
        %v1634 = vpop.f32.mrb[0].mxu0
        %v1635 = vadd.f32 %v1375, %v1634
        %v1636 = vpop.f32.mrb[0].mxu0
        %v1637 = vadd.f32 %v1371, %v1636
        %v1638 = vpop.f32.mrb[0].mxu0
        %v1639 = vadd.f32 %v1375, %v1638
        %1640 = vmatprep.mubr.bf16.mxu0 0
        %1641 = vmatmul.mubr.bf16.gmra.mrb[0].mxu0 %v1349
        %v1642 = vpop.f32.mrb[0].mxu0
        %v1643 = vadd.f32 %v1371, %v1642
        %v1644 = vpop.f32.mrb[0].mxu0
        %v1645 = vadd.f32 %v1375, %v1644
        %v1646 = vpop.f32.mrb[0].mxu0
        %v1647 = vadd.f32 %v1371, %v1646
        %v1648 = vpop.f32.mrb[0].mxu0
        %v1649 = vadd.f32 %v1375, %v1648
        %1650 = vdwg.mxu0
        %1651 = vst [vmem:[%s479] sm:$0xff] %v720
        %1652 = vst [vmem:[%s479 + $0x8] sm:$0xff] %v723
        %1653 = vst [vmem:[%s479 + $0x10] sm:$0xff] %v728
        %1654 = vst [vmem:[%s479 + $0x18] sm:$0xff] %v731
        %1655 = vst [vmem:[%s479 + $0x20] sm:$0xff] %v736
        %1656 = vst [vmem:[%s479 + $0x28] sm:$0xff] %v739
        %1657 = vst [vmem:[%s479 + $0x30] sm:$0xff] %v744
        %1658 = vst [vmem:[%s479 + $0x38] sm:$0xff] %v747
        %1659 = vst [vmem:[%s479 + $0x40] sm:$0xff] %v752
        %1660 = vst [vmem:[%s479 + $0x48] sm:$0xff] %v755
        %1661 = vst [vmem:[%s479 + $0x50] sm:$0xff] %v760
        %1662 = vst [vmem:[%s479 + $0x58] sm:$0xff] %v763
        %1663 = vst [vmem:[%s479 + $0x60] sm:$0xff] %v768
        %1664 = vst [vmem:[%s479 + $0x68] sm:$0xff] %v771
        %1665 = vst [vmem:[%s479 + $0x70] sm:$0xff] %v776
        %1666 = vst [vmem:[%s479 + $0x78] sm:$0xff] %v779
        %1667 = vst [vmem:[%s479 + $0x80] sm:$0xff] %v784
        %1668 = vst [vmem:[%s479 + $0x88] sm:$0xff] %v787
        %1669 = vst [vmem:[%s479 + $0x90] sm:$0xff] %v792
        %1670 = vst [vmem:[%s479 + $0x98] sm:$0xff] %v795
        %1671 = vst [vmem:[%s479 + $0xa0] sm:$0xff] %v800
        %1672 = vst [vmem:[%s479 + $0xa8] sm:$0xff] %v803
        %1673 = vst [vmem:[%s479 + $0xb0] sm:$0xff] %v808
        %1674 = vst [vmem:[%s479 + $0xb8] sm:$0xff] %v811
        %1675 = vst [vmem:[%s479 + $0xc0] sm:$0xff] %v816
        %1676 = vst [vmem:[%s479 + $0xc8] sm:$0xff] %v819
        %1677 = vst [vmem:[%s479 + $0xd0] sm:$0xff] %v824
        %1678 = vst [vmem:[%s479 + $0xd8] sm:$0xff] %v827
        %1679 = vst [vmem:[%s479 + $0xe0] sm:$0xff] %v832
        %1680 = vst [vmem:[%s479 + $0xe8] sm:$0xff] %v835
        %1681 = vst [vmem:[%s479 + $0xf0] sm:$0xff] %v840
        %1682 = vst [vmem:[%s479 + $0xf8] sm:$0xff] %v843
        %1683 = vst [vmem:[%s472] sm:$0xff] %v1208
        %1684 = vst [vmem:[%s472 + $0x8] sm:$0xff] %v1211
        %1685 = vst [vmem:[%s472 + $0x10] sm:$0xff] %v1216
        %1686 = vst [vmem:[%s472 + $0x18] sm:$0xff] %v1219
        %1687 = vst [vmem:[%s472 + $0x20] sm:$0xff] %v1224
        %1688 = vst [vmem:[%s472 + $0x28] sm:$0xff] %v1227
        %1689 = vst [vmem:[%s472 + $0x30] sm:$0xff] %v1232
        %1690 = vst [vmem:[%s472 + $0x38] sm:$0xff] %v1235
        %1691 = vst [vmem:[%s472 + $0x40] sm:$0xff] %v1240
        %1692 = vst [vmem:[%s472 + $0x48] sm:$0xff] %v1243
        %1693 = vst [vmem:[%s472 + $0x50] sm:$0xff] %v1248
        %1694 = vst [vmem:[%s472 + $0x58] sm:$0xff] %v1251
        %1695 = vst [vmem:[%s472 + $0x60] sm:$0xff] %v1256
        %1696 = vst [vmem:[%s472 + $0x68] sm:$0xff] %v1259
        %1697 = vst [vmem:[%s472 + $0x70] sm:$0xff] %v1264
        %1698 = vst [vmem:[%s472 + $0x78] sm:$0xff] %v1267
        %1699 = vst [vmem:[%s472 + $0x80] sm:$0xff] %v1272
        %1700 = vst [vmem:[%s472 + $0x88] sm:$0xff] %v1275
        %1701 = vst [vmem:[%s472 + $0x90] sm:$0xff] %v1280
        %1702 = vst [vmem:[%s472 + $0x98] sm:$0xff] %v1283
        %1703 = vst [vmem:[%s472 + $0xa0] sm:$0xff] %v1288
        %1704 = vst [vmem:[%s472 + $0xa8] sm:$0xff] %v1291
        %1705 = vst [vmem:[%s472 + $0xb0] sm:$0xff] %v1296
        %1706 = vst [vmem:[%s472 + $0xb8] sm:$0xff] %v1299
        %1707 = vst [vmem:[%s472 + $0xc0] sm:$0xff] %v1304
        %1708 = vst [vmem:[%s472 + $0xc8] sm:$0xff] %v1307
        %1709 = vst [vmem:[%s472 + $0xd0] sm:$0xff] %v1312
        %1710 = vst [vmem:[%s472 + $0xd8] sm:$0xff] %v1315
        %1711 = vst [vmem:[%s472 + $0xe0] sm:$0xff] %v1320
        %1712 = vst [vmem:[%s472 + $0xe8] sm:$0xff] %v1323
        %1713 = vst [vmem:[%s472 + $0xf0] sm:$0xff] %v1328
        %1714 = vst [vmem:[%s472 + $0xf8] sm:$0xff] %v1331
        %1715 = vst [vmem:[%s465] sm:$0xff] %v1493
        %1716 = vst [vmem:[%s465 + $0x8] sm:$0xff] %v1495
        %1717 = vst [vmem:[%s465 + $0x10] sm:$0xff] %v1497
        %1718 = vst [vmem:[%s465 + $0x18] sm:$0xff] %v1499
        %1719 = vst [vmem:[%s465 + $0x20] sm:$0xff] %v1503
        %1720 = vst [vmem:[%s465 + $0x28] sm:$0xff] %v1505
        %1721 = vst [vmem:[%s465 + $0x30] sm:$0xff] %v1507
        %1722 = vst [vmem:[%s465 + $0x38] sm:$0xff] %v1509
        %1723 = vst [vmem:[%s465 + $0x40] sm:$0xff] %v1513
        %1724 = vst [vmem:[%s465 + $0x48] sm:$0xff] %v1515
        %1725 = vst [vmem:[%s465 + $0x50] sm:$0xff] %v1517
        %1726 = vst [vmem:[%s465 + $0x58] sm:$0xff] %v1519
        %1727 = vst [vmem:[%s465 + $0x60] sm:$0xff] %v1523
        %1728 = vst [vmem:[%s465 + $0x68] sm:$0xff] %v1525
        %1729 = vst [vmem:[%s465 + $0x70] sm:$0xff] %v1527
        %1730 = vst [vmem:[%s465 + $0x78] sm:$0xff] %v1529
        %1731 = vst [vmem:[%s465 + $0x80] sm:$0xff] %v1533
        %1732 = vst [vmem:[%s465 + $0x88] sm:$0xff] %v1535
        %1733 = vst [vmem:[%s465 + $0x90] sm:$0xff] %v1537
        %1734 = vst [vmem:[%s465 + $0x98] sm:$0xff] %v1539
        %1735 = vst [vmem:[%s465 + $0xa0] sm:$0xff] %v1543
        %1736 = vst [vmem:[%s465 + $0xa8] sm:$0xff] %v1545
        %1737 = vst [vmem:[%s465 + $0xb0] sm:$0xff] %v1547
        %1738 = vst [vmem:[%s465 + $0xb8] sm:$0xff] %v1549
        %1739 = vst [vmem:[%s465 + $0xc0] sm:$0xff] %v1553
        %1740 = vst [vmem:[%s465 + $0xc8] sm:$0xff] %v1555
        %1741 = vst [vmem:[%s465 + $0xd0] sm:$0xff] %v1557
        %1742 = vst [vmem:[%s465 + $0xd8] sm:$0xff] %v1559
        %1743 = vst [vmem:[%s465 + $0xe0] sm:$0xff] %v1563
        %1744 = vst [vmem:[%s465 + $0xe8] sm:$0xff] %v1565
        %1745 = vst [vmem:[%s465 + $0xf0] sm:$0xff] %v1567
        %1746 = vst [vmem:[%s465 + $0xf8] sm:$0xff] %v1569
        %1747 = vst [vmem:[%s465 + $0x100] sm:$0xff] %v1573
        %1748 = vst [vmem:[%s465 + $0x108] sm:$0xff] %v1575
        %1749 = vst [vmem:[%s465 + $0x110] sm:$0xff] %v1577
        %1750 = vst [vmem:[%s465 + $0x118] sm:$0xff] %v1579
        %1751 = vst [vmem:[%s465 + $0x120] sm:$0xff] %v1583
        %1752 = vst [vmem:[%s465 + $0x128] sm:$0xff] %v1585
        %1753 = vst [vmem:[%s465 + $0x130] sm:$0xff] %v1587
        %1754 = vst [vmem:[%s465 + $0x138] sm:$0xff] %v1589
        %1755 = vst [vmem:[%s465 + $0x140] sm:$0xff] %v1593
        %1756 = vst [vmem:[%s465 + $0x148] sm:$0xff] %v1595
        %1757 = vst [vmem:[%s465 + $0x150] sm:$0xff] %v1597
        %1758 = vst [vmem:[%s465 + $0x158] sm:$0xff] %v1599
        %1759 = vst [vmem:[%s465 + $0x160] sm:$0xff] %v1603
        %1760 = vst [vmem:[%s465 + $0x168] sm:$0xff] %v1605
        %1761 = vst [vmem:[%s465 + $0x170] sm:$0xff] %v1607
        %1762 = vst [vmem:[%s465 + $0x178] sm:$0xff] %v1609
        %1763 = vst [vmem:[%s465 + $0x180] sm:$0xff] %v1613
        %1764 = vst [vmem:[%s465 + $0x188] sm:$0xff] %v1615
        %1765 = vst [vmem:[%s465 + $0x190] sm:$0xff] %v1617
        %1766 = vst [vmem:[%s465 + $0x198] sm:$0xff] %v1619
        %1767 = vst [vmem:[%s465 + $0x1a0] sm:$0xff] %v1623
        %1768 = vst [vmem:[%s465 + $0x1a8] sm:$0xff] %v1625
        %1769 = vst [vmem:[%s465 + $0x1b0] sm:$0xff] %v1627
        %1770 = vst [vmem:[%s465 + $0x1b8] sm:$0xff] %v1629
        %1771 = vst [vmem:[%s465 + $0x1c0] sm:$0xff] %v1633
        %1772 = vst [vmem:[%s465 + $0x1c8] sm:$0xff] %v1635
        %1773 = vst [vmem:[%s465 + $0x1d0] sm:$0xff] %v1637
        %1774 = vst [vmem:[%s465 + $0x1d8] sm:$0xff] %v1639
        %1775 = vst [vmem:[%s465 + $0x1e0] sm:$0xff] %v1643
        %1776 = vst [vmem:[%s465 + $0x1e8] sm:$0xff] %v1645
        %1777 = vst [vmem:[%s465 + $0x1f0] sm:$0xff] %v1647
        %1778 = vst [vmem:[%s465 + $0x1f8] sm:$0xff] %v1649
        %s1779 = sand.u32 %s221, 1
        %s1780 = scalar_lea.sflag [#allocation4], %s1779
        %s1781 = sand.u32 %s221, 1
        %s1782 = smul.addr %s1781, 512
        %s1783 = scalar_lea.vmem [#allocation11], %s1782
        %s1784 = sand.u32 %s35, 1
        %s1785 = scalar_lea.sflag [#allocation13], %s1784
        %s1786 = sand.u32 %s247, 1
        %s1787 = smul.addr %s1786, 256
        %s1788 = scalar_lea.vmem [#allocation12], %s1787
        %s1789 = sand.u32 %s35, 1
        %s1790 = scalar_lea.sflag [#allocation13], %s1789
        %s1791 = sand.u32 %s273, 1
        %s1792 = smul.addr %s1791, 256
        %s1793 = scalar_lea.vmem [#allocation14], %s1792
        // Predicated region
        $region73: #{tpu_custom_call.1} parent=51 // pred_check
          %p1794 = pneg %p231
        $region74: #{tpu_custom_call.1} parent=51 // pred_check_branch
          %1796 = sbr.rel (%p1794) target = $region76
        $region75: #{tpu_custom_call.1} parent=51 // pred_region
          %s1797 = smul.u32 32, %s35
          %s1799 = ssub.s32 8192, 8192
          %1800 = vsyncadd %s1780, %s1799
          %s1801 = smul.addr %s1797, 2
          %s1802 = smul.addr %s1801, 128
          %s1803 = scalar_lea.hbm %s8, %s1802
          %s1804 = sshll.u32 %s1783, 4
          %s1805 = int_to_ptr.vmem [resolvable:$true] %s1804
          %1810 = dma.vmem_to_hbm [thread:$0]  %s1805, 8192, %s1803, %s1780, 256, 256, 16
        $region76: #{tpu_custom_call.1} parent=51 // pred_fallthru
          _
        // Predicated region
        $region77: #{tpu_custom_call.1} parent=51 // pred_check
          %p1811 = pneg %p257
        $region78: #{tpu_custom_call.1} parent=51 // pred_check_branch
          %1813 = sbr.rel (%p1811) target = $region80
        $region79: #{tpu_custom_call.1} parent=51 // pred_region
          %s1814 = smul.u32 32, %s35
          %s1816 = ssub.s32 4096, 4096
          %1817 = vsyncadd %s1785, %s1816
          %s1818 = smul.addr %s1814, 128
          %s1819 = scalar_lea.hbm %s9, %s1818
          %s1820 = sshll.u32 %s1788, 4
          %s1821 = int_to_ptr.vmem [resolvable:$true] %s1820
          %1826 = dma.vmem_to_hbm [thread:$0]  %s1821, 4096, %s1819, %s1785, 128, 128, 8
        $region80: #{tpu_custom_call.1} parent=51 // pred_fallthru
          _
        // Predicated region
        $region81: #{tpu_custom_call.1} parent=51 // pred_check
          %p1827 = pneg %p283
        $region82: #{tpu_custom_call.1} parent=51 // pred_check_branch
          %1829 = sbr.rel (%p1827) target = $region84
        $region83: #{tpu_custom_call.1} parent=51 // pred_region
          %s1830 = smul.u32 32, %s35
          %s1832 = ssub.s32 4096, 4096
          %1833 = vsyncadd %s1790, %s1832
          %s1834 = smul.addr %s1830, 128
          %s1835 = scalar_lea.hbm %s10, %s1834
          %s1836 = sshll.u32 %s1793, 4
          %s1837 = int_to_ptr.vmem [resolvable:$true] %s1836
          %1842 = dma.vmem_to_hbm [thread:$0]  %s1837, 4096, %s1835, %s1790, 128, 128, 8
        $region84: #{tpu_custom_call.1} parent=51 // pred_fallthru
          _
      $region52: #{tpu_custom_call.1} parent=5 // pred_fallthru
        _
      %p1843 = scmp.le.s32.totalorder 2, %s30
      // Predicated region
      $region85: #{tpu_custom_call.1} parent=5 // pred_check
        %p1844 = pneg %p1843
      $region86: #{tpu_custom_call.1} parent=5 // pred_check_branch
        %1846 = sbr.rel (%p1844) target = $region88
      $region87: #{tpu_custom_call.1} parent=5 // pred_region
        %s1847 = ssub.s32 %s30, 2
        // Predicated region
        $region89: #{tpu_custom_call.1} parent=87 // pred_check
          %p1848 = pneg %p237
        $region90: #{tpu_custom_call.1} parent=87 // pred_check_branch
          %1850 = sbr.rel (%p1848) target = $region92
        $region91: #{tpu_custom_call.1} parent=87 // pred_region
          %s1851 = sand.u32 %s222, 1
          %s1852 = scalar_lea.sflag [#allocation4], %s1851
          %s1853 = sand.u32 %s222, 1
          %s1854 = smul.addr %s1853, 512
          %s1855 = scalar_lea.vmem [#allocation11], %s1854
          %1856 = dma.done %s1852, 8192
        $region92: #{tpu_custom_call.1} parent=87 // pred_fallthru
          _
        // Predicated region
        $region93: #{tpu_custom_call.1} parent=87 // pred_check
          %p1857 = pneg %p263
        $region94: #{tpu_custom_call.1} parent=87 // pred_check_branch
          %1859 = sbr.rel (%p1857) target = $region96
        $region95: #{tpu_custom_call.1} parent=87 // pred_region
          %s1860 = sand.u32 %s36, 1
          %s1861 = scalar_lea.sflag [#allocation13], %s1860
          %s1862 = sand.u32 %s248, 1
          %s1863 = smul.addr %s1862, 256
          %s1864 = scalar_lea.vmem [#allocation12], %s1863
          %1865 = dma.done %s1861, 4096
        $region96: #{tpu_custom_call.1} parent=87 // pred_fallthru
          _
        // Predicated region
        $region97: #{tpu_custom_call.1} parent=87 // pred_check
          %p1866 = pneg %p289
        $region98: #{tpu_custom_call.1} parent=87 // pred_check_branch
          %1868 = sbr.rel (%p1866) target = $region100
        $region99: #{tpu_custom_call.1} parent=87 // pred_region
          %s1869 = sand.u32 %s36, 1
          %s1870 = scalar_lea.sflag [#allocation13], %s1869
          %s1871 = sand.u32 %s274, 1
          %s1872 = smul.addr %s1871, 256
          %s1873 = scalar_lea.vmem [#allocation14], %s1872
          %1874 = dma.done %s1870, 4096
        $region100: #{tpu_custom_call.1} parent=87 // pred_fallthru
          _
      $region88: #{tpu_custom_call.1} parent=5 // pred_fallthru
        _
    $region6: #{tpu_custom_call.1} parent=1 // loop_footer
      %s34 = sadd.s32 1, %s30
    $region7: #{tpu_custom_call.1} parent=1 // loop_footer_branch
      %29 = sbr.rel target = $region3
    $region8: #{tpu_custom_call.1} parent=1 // loop_exit
      _
    %1875 = vsyncpa [#allocation3], 1
    %s1876 = scalar_lea.sflag [#allocation3], 1
    %1877 = vsyncpa %s1876, 1
    %1878 = vsyncpa [#allocation6], 1
    %s1879 = scalar_lea.sflag [#allocation6], 1
    %1880 = vsyncpa %s1879, 1
    %1881 = vsyncpa [#allocation9], 1
    %1882 = vsyncpa [#allocation4], 1
    %s1883 = scalar_lea.sflag [#allocation4], 1
    %1884 = vsyncpa %s1883, 1
    %1885 = vsyncpa [#allocation13], 1
    %s1886 = scalar_lea.sflag [#allocation13], 1
    %1887 = vsyncpa %s1886, 1

</llo_original>
